<compile_context>
chip_gen: v7x
topology: tpu7x:2x2x1
jax: 0.10.0
libtpu: 0.0.40
codegen_flags: <defaults>
</compile_context>

<pallas_src>
import jax
import jax.numpy as jnp
from jax.experimental import pallas as pl
from jax.experimental.pallas import tpu as pltpu


_SIZES = [100, 250, 500, 150, 50, 2]   # hidden1..hidden6 output widths
_LANE = 128


def _round_up(x, m):
    return (x + m - 1) // m * m


# ----------------------------------------------------------------------------
# Pallas kernel: whole 6-layer MLP fused.  All (padded, bf16) weights fit in
# well under 1 MiB, so they stay resident in VMEM; only the batch is tiled.
# ----------------------------------------------------------------------------
def _apigraph_fc_kernel(
    x_ref,
    w1_ref, b1_ref,
    w2_ref, b2_ref,
    w3_ref, b3_ref,
    w4_ref, b4_ref,
    w5_ref, b5_ref,
    w6_ref,
    out_ref,
):
    # Cast the (tb, inputsize) f32 batch tile to bf16 once (trivial VPU work);
    # keeps the x HBM DMA at its natural, unpadded width.
    h = x_ref[...].astype(jnp.bfloat16)

    def layer(h_bf16, w_ref, b_ref):
        # Linear (BN scale pre-folded into W) -> BN shift -> ReLU.
        # f32 accumulation + f32 epilogue; downcast to bf16 only right before
        # the next MXU dot (keep f32 epilogue: exact and v5e has no bf16 VPU).
        y = jnp.dot(h_bf16, w_ref[...], preferred_element_type=jnp.float32)
        y = jnp.maximum(y + b_ref[...], 0.0)
        return y.astype(jnp.bfloat16)

    h = layer(h, w1_ref, b1_ref)
    h = layer(h, w2_ref, b2_ref)
    h = layer(h, w3_ref, b3_ref)
    h = layer(h, w4_ref, b4_ref)
    h = layer(h, w5_ref, b5_ref)

    # forward_classifier: hidden6 Linear only (softmax=False path).
    # Narrow (tb, 2) store: the masked vst is negligible at this width and it
    # avoids writing a 128-wide zero-padded f32 slab to HBM.
    out_ref[...] = jnp.dot(h, w6_ref[...], preferred_element_type=jnp.float32)


def _full_spec(arr):
    # Grid-invariant (constant-index) weight/shift block; resident in VMEM.
    return pl.BlockSpec(arr.shape, lambda i: (0,) * arr.ndim)


def apigraph_fc_forward(x, prepared, *, batch_tile=1024):
    """Fused APIGRAPH_FC forward (eval mode, softmax=False path).

    x: [B, inputsize] float32 (any B).
    prepared: dict from prepare_params() with bf16 weights w1..w6 ([K, N_pad],
              BN scale folded, K of w1 = inputsize, N of w6 = 2) and f32
              shifts b1..b5 ([1, N_pad], padded entries zero).
    batch_tile: batch tile size; default 1024 (v6e/v7x).  Cap ~512 on v5e.
    """
    B, in_dim = x.shape
    assert in_dim == prepared["w1"].shape[0], "inputsize mismatch with prepared params"
    out_dim = prepared["w6"].shape[1]

    # --- Batch tile selection ------------------------------------------------
    # Large batches: tile is a multiple of 256 (amortizes the ~0.35us per-step
    # overhead, full MXU M panels) and the batch splits into >= 2 grid steps
    # so the "parallel" grid axis can use both v7x TensorCores.
    # Small batches: a single round_up(B, 16) tile (bf16 sublane multiple).
    if B <= batch_tile:
        tb = _round_up(B, 16)
    elif batch_tile >= 256:
        tb = min(_round_up(batch_tile, 256), _round_up(pl.cdiv(B, 2), 256))
    else:
        tb = _round_up(batch_tile, 16)     # explicit tiny tiles (testing)
    grid = pl.cdiv(B, tb)

    # The batch is never padded up to a full tile multiple: multi-tile ragged
    # batches rely on Pallas' partial-block clipping (rows beyond B are never
    # stored).  Only the single-tile case pads (< 16 rows, sublane alignment).
    x_in = x
    if grid == 1 and tb != B:
        x_in = jnp.zeros((tb, in_dim), x.dtype).at[:B].set(x)

    in_specs = [pl.BlockSpec((tb, in_dim), lambda i: (i, 0))]
    operands = [x_in]
    for li in range(1, 6):
        w = prepared[f"w{li}"]
        b = prepared[f"b{li}"]
        in_specs += [_full_spec(w), _full_spec(b)]
        operands += [w, b]
    in_specs += [_full_spec(prepared["w6"])]
    operands += [prepared["w6"]]

    # Advisory cost hint so XLA schedules/overlaps the custom call sensibly.
    flops = 2 * B * sum(prepared[f"w{li}"].shape[0] * prepared[f"w{li}"].shape[1]
                        for li in range(1, 7))
    bytes_accessed = int(
        x_in.size * x_in.dtype.itemsize
        + B * out_dim * 4
        + sum(int(v.size) * v.dtype.itemsize for v in prepared.values())
    )

    out = pl.pallas_call(
        _apigraph_fc_kernel,
        out_shape=jax.ShapeDtypeStruct((x_in.shape[0], out_dim), jnp.float32),
        grid_spec=pltpu.PrefetchScalarGridSpec(
            num_scalar_prefetch=0,
            grid=(grid,),
            in_specs=in_specs,
            out_specs=pl.BlockSpec((tb, out_dim), lambda i: (i, 0)),
        ),
        compiler_params=pltpu.CompilerParams(
            dimension_semantics=("parallel",),   # shards batch tiles on v7x's 2 TCs
        ),
        cost_estimate=pl.CostEstimate(
            flops=flops, transcendentals=0, bytes_accessed=bytes_accessed),
    )(*operands)

    return out[:B]


# ----------------------------------------------------------------------------
# Deterministic parameter construction (synthetic, mirrors module __init__).
# ----------------------------------------------------------------------------
def make_raw_params(key, inputsize):
    """PyTorch-layout params: kaiming-uniform Linear weights [out, in] (no
    bias) and eval-mode BatchNorm1d affine/statistics for layers 1..5."""
    sizes = [inputsize] + _SIZES
    params = {}
    keys = jax.random.split(key, 6 + 5 * 4)
    ki = 0
    for li in range(1, 7):
        fan_in, fan_out = sizes[li - 1], sizes[li]
        # kaiming_uniform_ with nonlinearity='relu': bound = sqrt(6 / fan_in).
        bound = jnp.sqrt(6.0 / fan_in)
        params[f"W{li}"] = jax.random.uniform(
            keys[ki], (fan_out, fan_in), minval=-bound, maxval=bound,
            dtype=jnp.float32)
        ki += 1
        if li <= 5:
            params[f"gamma{li}"] = 1.0 + 0.1 * jax.random.normal(keys[ki], (fan_out,)); ki += 1
            params[f"beta{li}"] = 0.1 * jax.random.normal(keys[ki], (fan_out,)); ki += 1
            params[f"rmean{li}"] = 0.05 * jax.random.normal(keys[ki], (fan_out,)); ki += 1
            params[f"rvar{li}"] = 1.0 + 0.1 * jax.random.uniform(keys[ki], (fan_out,)); ki += 1
    return params


def prepare_params(raw, inputsize, eps=1e-5):
    """Fold eval-mode BN scale into weight columns, transpose to [in, out],
    zero-pad hidden feature dims to a multiple of 128, cast weights to bf16.
    Layer 1 keeps K = inputsize (x is fed unpadded); layer 6 keeps N = 2."""
    sizes = [inputsize] + _SIZES
    k_pads = [inputsize] + [_round_up(s, _LANE) for s in _SIZES[:-1]]
    n_pads = [_round_up(s, _LANE) for s in _SIZES[:-1]] + [_SIZES[-1]]
    prepared = {}
    for li in range(1, 7):
        k, n = sizes[li - 1], sizes[li]
        kp, npad = k_pads[li - 1], n_pads[li - 1]
        w = raw[f"W{li}"].T.astype(jnp.float32)          # [in, out]
        if li <= 5:
            scale = raw[f"gamma{li}"] / jnp.sqrt(raw[f"rvar{li}"] + eps)
            shift = raw[f"beta{li}"] - raw[f"rmean{li}"] * scale
            w = w * scale[None, :]                        # fold BN scale
            b = jnp.zeros((1, npad), jnp.float32).at[0, :n].set(shift)
            prepared[f"b{li}"] = b                        # padded shift = 0 (exact)
        wp = jnp.zeros((kp, npad), jnp.float32).at[:k, :n].set(w)
        prepared[f"w{li}"] = wp.astype(jnp.bfloat16)
    return prepared


# ----------------------------------------------------------------------------
# References.
# ----------------------------------------------------------------------------
def reference_forward_f32(x, raw, eps=1e-5):
    """Pure-f32 reference equal to the PyTorch module in eval() mode."""
    h = x.astype(jnp.float32)
    for li in range(1, 6):
        h = h @ raw[f"W{li}"].T
        scale = raw[f"gamma{li}"] / jnp.sqrt(raw[f"rvar{li}"] + eps)
        shift = raw[f"beta{li}"] - raw[f"rmean{li}"] * scale
        h = jnp.maximum(h * scale + shift, 0.0)
    return h @ raw["W6"].T


def reference_forward_prepared(x, prepared):
    """Plain-JAX replica of the kernel math (bf16 matmuls, f32 accum/epilogue)."""
    h = x.astype(jnp.bfloat16)
    for li in range(1, 6):
        y = jnp.dot(h, prepared[f"w{li}"], preferred_element_type=jnp.float32)
        h = jnp.maximum(y + prepared[f"b{li}"], 0.0).astype(jnp.bfloat16)
    return jnp.dot(h, prepared["w6"], preferred_element_type=jnp.float32)


if __name__ == "__main__":
    inputsize = 32

    key = jax.random.PRNGKey(0)
    kx, kp = jax.random.split(key)
    raw = make_raw_params(kp, inputsize)
    prepared = prepare_params(raw, inputsize)

    fwd = jax.jit(lambda xx: apigraph_fc_forward(xx, prepared))

    # Small example (single batch tile, batch padded 8 -> 16 internally).
    x = jax.random.normal(kx, (8, inputsize), dtype=jnp.float32)
    out = jax.block_until_ready(fwd(x))
    assert out.shape == (8, 2), out.shape

    ref_same_math = reference_forward_prepared(x, prepared)
    assert jnp.allclose(out, ref_same_math, atol=1e-3, rtol=1e-3), (
        f"max err vs bf16 reference {jnp.max(jnp.abs(out - ref_same_math))}")

    # Loose sanity check against the full-f32 (unfolded, unpadded) math.
    # NOTE: bf16 weights/activations are an intentional numerics change vs the
    # f32 PyTorch module (eval-mode classifier); tolerance is scale-relative.
    ref_f32 = reference_forward_f32(x, raw)
    tol = 0.05 * float(jnp.max(jnp.abs(ref_f32))) + 0.1
    assert float(jnp.max(jnp.abs(out - ref_f32))) < tol, (
        f"max err vs f32 reference {jnp.max(jnp.abs(out - ref_f32))} (tol {tol})")

    # Exercise the multi-tile + ragged-last-block path (batch 20, tile 16).
    fwd_tiled = jax.jit(lambda xx: apigraph_fc_forward(xx, prepared, batch_tile=16))
    x2 = jax.random.normal(jax.random.PRNGKey(1), (20, inputsize),
                           dtype=jnp.float32)
    out2 = jax.block_until_ready(fwd_tiled(x2))
    ref2 = reference_forward_prepared(x2, prepared)
    assert out2.shape == (20, 2), out2.shape
    assert jnp.allclose(out2, ref2, atol=1e-3, rtol=1e-3), (
        f"max err (tiled) {jnp.max(jnp.abs(out2 - ref2))}")

    print("KERNEL_OK")
</pallas_src>

<mosaic_0001>
module attributes {stable_mosaic.version = 11 : i64} {
  func.func @_apigraph_fc_kernel(%arg0: i32, %arg1: memref<16x32xf32, #tpu.memory_space<vmem>>, %arg2: memref<32x128xbf16, #tpu.memory_space<vmem>>, %arg3: memref<1x128xf32, #tpu.memory_space<vmem>>, %arg4: memref<128x256xbf16, #tpu.memory_space<vmem>>, %arg5: memref<1x256xf32, #tpu.memory_space<vmem>>, %arg6: memref<256x512xbf16, #tpu.memory_space<vmem>>, %arg7: memref<1x512xf32, #tpu.memory_space<vmem>>, %arg8: memref<512x256xbf16, #tpu.memory_space<vmem>>, %arg9: memref<1x256xf32, #tpu.memory_space<vmem>>, %arg10: memref<256x128xbf16, #tpu.memory_space<vmem>>, %arg11: memref<1x128xf32, #tpu.memory_space<vmem>>, %arg12: memref<128x2xbf16, #tpu.memory_space<vmem>>, %arg13: memref<16x2xf32, #tpu.memory_space<vmem>>) attributes {dimension_semantics = [#tpu.dimension_semantics<parallel>], iteration_bounds = array<i64: 1>, scalar_prefetch = 0 : i64, scratch_operands = 0 : i64, tpu.core_type = #tpu.core_type<tc>, window_params = [{transform_indices = @transform_0, window_bounds = array<i64: 16, 32>}, {pipeline_mode = #tpu.pipeline_mode<synchronous>, transform_indices = @transform_1, window_bounds = array<i64: 32, 128>}, {pipeline_mode = #tpu.pipeline_mode<synchronous>, transform_indices = @transform_2, window_bounds = array<i64: 1, 128>}, {pipeline_mode = #tpu.pipeline_mode<synchronous>, transform_indices = @transform_3, window_bounds = array<i64: 128, 256>}, {pipeline_mode = #tpu.pipeline_mode<synchronous>, transform_indices = @transform_4, window_bounds = array<i64: 1, 256>}, {pipeline_mode = #tpu.pipeline_mode<synchronous>, transform_indices = @transform_5, window_bounds = array<i64: 256, 512>}, {pipeline_mode = #tpu.pipeline_mode<synchronous>, transform_indices = @transform_6, window_bounds = array<i64: 1, 512>}, {pipeline_mode = #tpu.pipeline_mode<synchronous>, transform_indices = @transform_7, window_bounds = array<i64: 512, 256>}, {pipeline_mode = #tpu.pipeline_mode<synchronous>, transform_indices = @transform_8, window_bounds = array<i64: 1, 256>}, {pipeline_mode = #tpu.pipeline_mode<synchronous>, transform_indices = @transform_9, window_bounds = array<i64: 256, 128>}, {pipeline_mode = #tpu.pipeline_mode<synchronous>, transform_indices = @transform_10, window_bounds = array<i64: 1, 128>}, {pipeline_mode = #tpu.pipeline_mode<synchronous>, transform_indices = @transform_11, window_bounds = array<i64: 128, 2>}, {transform_indices = @transform_12, window_bounds = array<i64: 16, 2>}]} {
    %c0 = arith.constant 0 : index
    %c0_0 = arith.constant 0 : index
    %0 = vector.load %arg1[%c0, %c0_0] : memref<16x32xf32, #tpu.memory_space<vmem>>, vector<16x32xf32>
    %1 = arith.truncf %0 : vector<16x32xf32> to vector<16x32xbf16>
    %c0_1 = arith.constant 0 : index
    %c0_2 = arith.constant 0 : index
    %2 = vector.load %arg2[%c0_1, %c0_2] : memref<32x128xbf16, #tpu.memory_space<vmem>>, vector<32x128xbf16>
    %cst = arith.constant dense<0.000000e+00> : vector<16x128xf32>
    %3 = tpu.matmul %1, %2, %cst {dimension_numbers = #tpu.dot_dimension_numbers<[1], [0], [0], [1], [0, 0, 1, 1], [], []>} : vector<16x32xbf16>, vector<32x128xbf16>, vector<16x128xf32> -> vector<16x128xf32>
    %c0_3 = arith.constant 0 : index
    %c0_4 = arith.constant 0 : index
    %4 = vector.load %arg3[%c0_3, %c0_4] : memref<1x128xf32, #tpu.memory_space<vmem>>, vector<1x128xf32>
    %5 = vector.broadcast %4 : vector<1x128xf32> to vector<16x128xf32>
    %6 = arith.addf %3, %5 : vector<16x128xf32>
    %cst_5 = arith.constant 0.000000e+00 : f32
    %7 = vector.broadcast %cst_5 : f32 to vector<16x128xf32>
    %8 = arith.maximumf %6, %7 : vector<16x128xf32>
    %9 = arith.truncf %8 : vector<16x128xf32> to vector<16x128xbf16>
    %c0_6 = arith.constant 0 : index
    %c0_7 = arith.constant 0 : index
    %10 = vector.load %arg4[%c0_6, %c0_7] : memref<128x256xbf16, #tpu.memory_space<vmem>>, vector<128x256xbf16>
    %cst_8 = arith.constant dense<0.000000e+00> : vector<16x256xf32>
    %11 = tpu.matmul %9, %10, %cst_8 {dimension_numbers = #tpu.dot_dimension_numbers<[1], [0], [0], [1], [0, 0, 1, 1], [], []>} : vector<16x128xbf16>, vector<128x256xbf16>, vector<16x256xf32> -> vector<16x256xf32>
    %c0_9 = arith.constant 0 : index
    %c0_10 = arith.constant 0 : index
    %12 = vector.load %arg5[%c0_9, %c0_10] : memref<1x256xf32, #tpu.memory_space<vmem>>, vector<1x256xf32>
    %13 = vector.broadcast %12 : vector<1x256xf32> to vector<16x256xf32>
    %14 = arith.addf %11, %13 : vector<16x256xf32>
    %cst_11 = arith.constant 0.000000e+00 : f32
    %15 = vector.broadcast %cst_11 : f32 to vector<16x256xf32>
    %16 = arith.maximumf %14, %15 : vector<16x256xf32>
    %17 = arith.truncf %16 : vector<16x256xf32> to vector<16x256xbf16>
    %c0_12 = arith.constant 0 : index
    %c0_13 = arith.constant 0 : index
    %18 = vector.load %arg6[%c0_12, %c0_13] : memref<256x512xbf16, #tpu.memory_space<vmem>>, vector<256x512xbf16>
    %cst_14 = arith.constant dense<0.000000e+00> : vector<16x512xf32>
    %19 = tpu.matmul %17, %18, %cst_14 {dimension_numbers = #tpu.dot_dimension_numbers<[1], [0], [0], [1], [0, 0, 1, 1], [], []>} : vector<16x256xbf16>, vector<256x512xbf16>, vector<16x512xf32> -> vector<16x512xf32>
    %c0_15 = arith.constant 0 : index
    %c0_16 = arith.constant 0 : index
    %20 = vector.load %arg7[%c0_15, %c0_16] : memref<1x512xf32, #tpu.memory_space<vmem>>, vector<1x512xf32>
    %21 = vector.broadcast %20 : vector<1x512xf32> to vector<16x512xf32>
    %22 = arith.addf %19, %21 : vector<16x512xf32>
    %cst_17 = arith.constant 0.000000e+00 : f32
    %23 = vector.broadcast %cst_17 : f32 to vector<16x512xf32>
    %24 = arith.maximumf %22, %23 : vector<16x512xf32>
    %25 = arith.truncf %24 : vector<16x512xf32> to vector<16x512xbf16>
    %c0_18 = arith.constant 0 : index
    %c0_19 = arith.constant 0 : index
    %26 = vector.load %arg8[%c0_18, %c0_19] : memref<512x256xbf16, #tpu.memory_space<vmem>>, vector<512x256xbf16>
    %cst_20 = arith.constant dense<0.000000e+00> : vector<16x256xf32>
    %27 = tpu.matmul %25, %26, %cst_20 {dimension_numbers = #tpu.dot_dimension_numbers<[1], [0], [0], [1], [0, 0, 1, 1], [], []>} : vector<16x512xbf16>, vector<512x256xbf16>, vector<16x256xf32> -> vector<16x256xf32>
    %c0_21 = arith.constant 0 : index
    %c0_22 = arith.constant 0 : index
    %28 = vector.load %arg9[%c0_21, %c0_22] : memref<1x256xf32, #tpu.memory_space<vmem>>, vector<1x256xf32>
    %29 = vector.broadcast %28 : vector<1x256xf32> to vector<16x256xf32>
    %30 = arith.addf %27, %29 : vector<16x256xf32>
    %cst_23 = arith.constant 0.000000e+00 : f32
    %31 = vector.broadcast %cst_23 : f32 to vector<16x256xf32>
    %32 = arith.maximumf %30, %31 : vector<16x256xf32>
    %33 = arith.truncf %32 : vector<16x256xf32> to vector<16x256xbf16>
    %c0_24 = arith.constant 0 : index
    %c0_25 = arith.constant 0 : index
    %34 = vector.load %arg10[%c0_24, %c0_25] : memref<256x128xbf16, #tpu.memory_space<vmem>>, vector<256x128xbf16>
    %cst_26 = arith.constant dense<0.000000e+00> : vector<16x128xf32>
    %35 = tpu.matmul %33, %34, %cst_26 {dimension_numbers = #tpu.dot_dimension_numbers<[1], [0], [0], [1], [0, 0, 1, 1], [], []>} : vector<16x256xbf16>, vector<256x128xbf16>, vector<16x128xf32> -> vector<16x128xf32>
    %c0_27 = arith.constant 0 : index
    %c0_28 = arith.constant 0 : index
    %36 = vector.load %arg11[%c0_27, %c0_28] : memref<1x128xf32, #tpu.memory_space<vmem>>, vector<1x128xf32>
    %37 = vector.broadcast %36 : vector<1x128xf32> to vector<16x128xf32>
    %38 = arith.addf %35, %37 : vector<16x128xf32>
    %cst_29 = arith.constant 0.000000e+00 : f32
    %39 = vector.broadcast %cst_29 : f32 to vector<16x128xf32>
    %40 = arith.maximumf %38, %39 : vector<16x128xf32>
    %41 = arith.truncf %40 : vector<16x128xf32> to vector<16x128xbf16>
    %c0_30 = arith.constant 0 : index
    %c0_31 = arith.constant 0 : index
    %42 = vector.load %arg12[%c0_30, %c0_31] : memref<128x2xbf16, #tpu.memory_space<vmem>>, vector<128x2xbf16>
    %cst_32 = arith.constant dense<0.000000e+00> : vector<16x2xf32>
    %43 = tpu.matmul %41, %42, %cst_32 {dimension_numbers = #tpu.dot_dimension_numbers<[1], [0], [0], [1], [0, 0, 1, 1], [], []>} : vector<16x128xbf16>, vector<128x2xbf16>, vector<16x2xf32> -> vector<16x2xf32>
    %c0_33 = arith.constant 0 : index
    %c0_34 = arith.constant 0 : index
    %44 = vector.load %arg13[%c0_33, %c0_34] : memref<16x2xf32, #tpu.memory_space<vmem>>, vector<16x2xf32>
    tpu.vector_store %arg13[%c0_33, %c0_34], %43 {strides = array<i32>} : memref<16x2xf32, #tpu.memory_space<vmem>>, vector<16x2xf32>,
    return
  }
  func.func @transform_0(%arg0: i32) -> (i32, i32) {
    %c0_i32 = arith.constant 0 : i32
    %c0_i32_0 = arith.constant 0 : i32
    return %arg0, %c0_i32 : i32, i32
  }
  func.func @transform_1(%arg0: i32) -> (i32, i32) {
    %c0_i32 = arith.constant 0 : i32
    %c0_i32_0 = arith.constant 0 : i32
    %c0_i32_1 = arith.constant 0 : i32
    return %c0_i32, %c0_i32_0 : i32, i32
  }
  func.func @transform_2(%arg0: i32) -> (i32, i32) {
    %c0_i32 = arith.constant 0 : i32
    %c0_i32_0 = arith.constant 0 : i32
    %c0_i32_1 = arith.constant 0 : i32
    return %c0_i32, %c0_i32_0 : i32, i32
  }
  func.func @transform_3(%arg0: i32) -> (i32, i32) {
    %c0_i32 = arith.constant 0 : i32
    %c0_i32_0 = arith.constant 0 : i32
    %c0_i32_1 = arith.constant 0 : i32
    return %c0_i32, %c0_i32_0 : i32, i32
  }
  func.func @transform_4(%arg0: i32) -> (i32, i32) {
    %c0_i32 = arith.constant 0 : i32
    %c0_i32_0 = arith.constant 0 : i32
    %c0_i32_1 = arith.constant 0 : i32
    return %c0_i32, %c0_i32_0 : i32, i32
  }
  func.func @transform_5(%arg0: i32) -> (i32, i32) {
    %c0_i32 = arith.constant 0 : i32
    %c0_i32_0 = arith.constant 0 : i32
    %c0_i32_1 = arith.constant 0 : i32
    return %c0_i32, %c0_i32_0 : i32, i32
  }
  func.func @transform_6(%arg0: i32) -> (i32, i32) {
    %c0_i32 = arith.constant 0 : i32
    %c0_i32_0 = arith.constant 0 : i32
    %c0_i32_1 = arith.constant 0 : i32
    return %c0_i32, %c0_i32_0 : i32, i32
  }
  func.func @transform_7(%arg0: i32) -> (i32, i32) {
    %c0_i32 = arith.constant 0 : i32
    %c0_i32_0 = arith.constant 0 : i32
    %c0_i32_1 = arith.constant 0 : i32
    return %c0_i32, %c0_i32_0 : i32, i32
  }
  func.func @transform_8(%arg0: i32) -> (i32, i32) {
    %c0_i32 = arith.constant 0 : i32
    %c0_i32_0 = arith.constant 0 : i32
    %c0_i32_1 = arith.constant 0 : i32
    return %c0_i32, %c0_i32_0 : i32, i32
  }
  func.func @transform_9(%arg0: i32) -> (i32, i32) {
    %c0_i32 = arith.constant 0 : i32
    %c0_i32_0 = arith.constant 0 : i32
    %c0_i32_1 = arith.constant 0 : i32
    return %c0_i32, %c0_i32_0 : i32, i32
  }
  func.func @transform_10(%arg0: i32) -> (i32, i32) {
    %c0_i32 = arith.constant 0 : i32
    %c0_i32_0 = arith.constant 0 : i32
    %c0_i32_1 = arith.constant 0 : i32
    return %c0_i32, %c0_i32_0 : i32, i32
  }
  func.func @transform_11(%arg0: i32) -> (i32, i32) {
    %c0_i32 = arith.constant 0 : i32
    %c0_i32_0 = arith.constant 0 : i32
    %c0_i32_1 = arith.constant 0 : i32
    return %c0_i32, %c0_i32_0 : i32, i32
  }
  func.func @transform_12(%arg0: i32) -> (i32, i32) {
    %c0_i32 = arith.constant 0 : i32
    %c0_i32_0 = arith.constant 0 : i32
    return %arg0, %c0_i32 : i32, i32
  }
}

</mosaic_0001>

<llo_original>
// kernel: _lambda_.1
$region0: #{_lambda_.1}
  #allocation0 [shape = 'u32[]', space=smem, size = 0x4, offset = 0x4, fixed_abs, tag = 'smem constant byte address 0x4 - core index']
  #allocation1 [shape = 'u32[144,128]{1,0:T(1,128)}', space=vmem, size = 0x12000, scoped, tag = 'internal scratch']
  %s0 = inlined_call_operand.vmem [shape: f32[16,32], index: 0, kind: input, shape index: {}]
  %s1 = inlined_call_operand.vmem [shape: bf16[32,128], index: 1, kind: input, shape index: {}]
  %s2 = inlined_call_operand.vmem [shape: f32[1,128], index: 2, kind: input, shape index: {}]
  %s3 = inlined_call_operand.vmem [shape: bf16[128,256], index: 3, kind: input, shape index: {}]
  %s4 = inlined_call_operand.vmem [shape: f32[1,256], index: 4, kind: input, shape index: {}]
  %s5 = inlined_call_operand.vmem [shape: bf16[256,512], index: 5, kind: input, shape index: {}]
  %s6 = inlined_call_operand.vmem [shape: f32[1,512], index: 6, kind: input, shape index: {}]
  %s7 = inlined_call_operand.vmem [shape: bf16[512,256], index: 7, kind: input, shape index: {}]
  %s8 = inlined_call_operand.vmem [shape: f32[1,256], index: 8, kind: input, shape index: {}]
  %s9 = inlined_call_operand.vmem [shape: bf16[256,128], index: 9, kind: input, shape index: {}]
  %s10 = inlined_call_operand.vmem [shape: f32[1,128], index: 10, kind: input, shape index: {}]
  %s11 = inlined_call_operand.vmem [shape: bf16[128,2], index: 11, kind: input, shape index: {}]
  %s12 = inlined_call_operand.vmem [shape: f32[16,2], index: 12, kind: output, shape index: {}]
  %s13 = sld [smem:[#allocation0]]
  $region58: #{_lambda_.1} parent=0
    _
  %s15 = ssub.s32 1, %s13
  %s16 = scalar_select 0, %s15, %s13
  // Predicated region
  $region2: #{_lambda_.1} parent=0 // pred_check
    _
  $region3: #{_lambda_.1} parent=0 // pred_check_branch
    %18 = sbr.rel (0) target = $region5
  $region4: #{_lambda_.1} parent=0 // pred_region
    _
  $region5: #{_lambda_.1} parent=0 // pred_fallthru
    _
  // Predicated region
  $region6: #{_lambda_.1} parent=0 // pred_check
    _
  $region7: #{_lambda_.1} parent=0 // pred_check_branch
    %20 = sbr.rel (0) target = $region9
  $region8: #{_lambda_.1} parent=0 // pred_region
    _
  $region9: #{_lambda_.1} parent=0 // pred_fallthru
    _
  // Predicated region
  $region10: #{_lambda_.1} parent=0 // pred_check
    _
  $region11: #{_lambda_.1} parent=0 // pred_check_branch
    %22 = sbr.rel (0) target = $region13
  $region12: #{_lambda_.1} parent=0 // pred_region
    _
  $region13: #{_lambda_.1} parent=0 // pred_fallthru
    _
  // Predicated region
  $region14: #{_lambda_.1} parent=0 // pred_check
    _
  $region15: #{_lambda_.1} parent=0 // pred_check_branch
    %24 = sbr.rel (0) target = $region17
  $region16: #{_lambda_.1} parent=0 // pred_region
    _
  $region17: #{_lambda_.1} parent=0 // pred_fallthru
    _
  // Predicated region
  $region18: #{_lambda_.1} parent=0 // pred_check
    _
  $region19: #{_lambda_.1} parent=0 // pred_check_branch
    %26 = sbr.rel (0) target = $region21
  $region20: #{_lambda_.1} parent=0 // pred_region
    _
  $region21: #{_lambda_.1} parent=0 // pred_fallthru
    _
  // Predicated region
  $region22: #{_lambda_.1} parent=0 // pred_check
    _
  $region23: #{_lambda_.1} parent=0 // pred_check_branch
    %28 = sbr.rel (0) target = $region25
  $region24: #{_lambda_.1} parent=0 // pred_region
    _
  $region25: #{_lambda_.1} parent=0 // pred_fallthru
    _
  // Predicated region
  $region26: #{_lambda_.1} parent=0 // pred_check
    _
  $region27: #{_lambda_.1} parent=0 // pred_check_branch
    %30 = sbr.rel (0) target = $region29
  $region28: #{_lambda_.1} parent=0 // pred_region
    _
  $region29: #{_lambda_.1} parent=0 // pred_fallthru
    _
  // Predicated region
  $region30: #{_lambda_.1} parent=0 // pred_check
    _
  $region31: #{_lambda_.1} parent=0 // pred_check_branch
    %32 = sbr.rel (0) target = $region33
  $region32: #{_lambda_.1} parent=0 // pred_region
    _
  $region33: #{_lambda_.1} parent=0 // pred_fallthru
    _
  // Predicated region
  $region34: #{_lambda_.1} parent=0 // pred_check
    _
  $region35: #{_lambda_.1} parent=0 // pred_check_branch
    %34 = sbr.rel (0) target = $region37
  $region36: #{_lambda_.1} parent=0 // pred_region
    _
  $region37: #{_lambda_.1} parent=0 // pred_fallthru
    _
  // Predicated region
  $region38: #{_lambda_.1} parent=0 // pred_check
    _
  $region39: #{_lambda_.1} parent=0 // pred_check_branch
    %36 = sbr.rel (0) target = $region41
  $region40: #{_lambda_.1} parent=0 // pred_region
    _
  $region41: #{_lambda_.1} parent=0 // pred_fallthru
    _
  // Predicated region
  $region42: #{_lambda_.1} parent=0 // pred_check
    _
  $region43: #{_lambda_.1} parent=0 // pred_check_branch
    %38 = sbr.rel (0) target = $region45
  $region44: #{_lambda_.1} parent=0 // pred_region
    _
  $region45: #{_lambda_.1} parent=0 // pred_fallthru
    _
  // Predicated region
  $region46: #{_lambda_.1} parent=0 // pred_check
    _
  $region47: #{_lambda_.1} parent=0 // pred_check_branch
    %40 = sbr.rel (0) target = $region49
  $region48: #{_lambda_.1} parent=0 // pred_region
    _
  $region49: #{_lambda_.1} parent=0 // pred_fallthru
    _
  %v42 = vld [vmem:[%s0] sm:$0xff]
  %v43 = vld [vmem:[%s0 + $0x8] sm:$0xff]
  %v44 = vpack.c.bf16 %v43, %v42
  %v45 = vld [vmem:[%s1] sm:$0xf]
  %v46 = vld [vmem:[%s1 + $0x4] sm:$0xf]
  %v47 = vld [vmem:[%s1 + $0x8] sm:$0xf]
  %v48 = vld [vmem:[%s1 + $0xc] sm:$0xf]
  %v49 = vld [vmem:[%s2] sm:$0x1]
  %v51 = vlaneseq
  %v52 = vshrl.u32 %v51, 7
  %v53 = vsub.s32 0, %v52
  %v54 = vrot.slane %v49, %v53
  %v60 = vunpack.c.l.b16 %v45
  %v61 = vunpack.c.l.b16 %v46
  %v62 = vunpack.c.l.b16 %v47
  %v63 = vunpack.c.l.b16 %v48
  %v64 = vpack.c.b16 %v61, %v60
  %v65 = vpack.c.b16 %v63, %v62
  %vm68 = vcmask 261120
  %v70 = vsel %vm68, %v44, 0
  %72 = vmatprep.subr.bf16.mxu0 0
  %73 = vmatpush1.bf16.msra.mxu0 %v64
  %74 = vmatprep.subr.bf16.mxu0 0
  %75 = vmatpush1.bf16.msra.mxu0 %v65
  %76 = vmatprep.subr.bf16.mxu0 0
  %77 = vmatpush1.bf16.msra.mxu0 0
  %78 = vmatprep.subr.bf16.mxu0 0
  %79 = vmatpush1.bf16.msra.mxu0 0
  %80 = vmatprep.subr.bf16.mxu0 0
  %81 = vmatpush1.bf16.msra.mxu0 0
  %82 = vmatprep.subr.bf16.mxu0 0
  %83 = vmatpush1.bf16.msra.mxu0 0
  %84 = vmatprep.subr.bf16.mxu0 0
  %85 = vmatpush1.bf16.msra.mxu0 0
  %86 = vmatprep.subr.bf16.mxu0 0
  %87 = vmatpush1.bf16.msra.mxu0 0
  %88 = vmatprep.subr.bf16.mxu0 0
  %89 = vmatpush1.bf16.msra.mxu0 0
  %90 = vmatprep.subr.bf16.mxu0 0
  %91 = vmatpush1.bf16.msra.mxu0 0
  %92 = vmatprep.subr.bf16.mxu0 0
  %93 = vmatpush1.bf16.msra.mxu0 0
  %94 = vmatprep.subr.bf16.mxu0 0
  %95 = vmatpush1.bf16.msra.mxu0 0
  %96 = vmatprep.subr.bf16.mxu0 0
  %97 = vmatpush1.bf16.msra.mxu0 0
  %98 = vmatprep.subr.bf16.mxu0 0
  %99 = vmatpush1.bf16.msra.mxu0 0
  %100 = vmatprep.subr.bf16.mxu0 0
  %101 = vmatpush1.bf16.msra.mxu0 0
  %102 = vmatprep.subr.bf16.mxu0 0
  %103 = vmatpush1.bf16.msra.mxu0 0
  %104 = vmatprep.mubr.bf16.mxu0 0
  %105 = vmatmul.mubr.bf16.gmra.mrb[0].mxu0 %v70
  %v106 = vpop.f32.mrb[0].mxu0
  %v107 = vadd.f32 %v54, %v106
  %v108 = vpop.f32.mrb[0].mxu0
  %v109 = vpop.f32.mrb[0].mxu0
  %v110 = vadd.f32 %v54, %v109
  %v111 = vpop.f32.mrb[0].mxu0
  %112 = vdwg.mxu0
  %v113 = vmax.f32 %v107, 0.0
  %v114 = vmax.f32 %v110, 0.0
  %v115 = vpack.c.bf16 %v114, %v113
  %v116 = vld [vmem:[%s3] sm:$0xff]
  %v117 = vld [vmem:[%s3 + $0x8] sm:$0xff]
  %v118 = vld [vmem:[%s3 + $0x10] sm:$0xff]
  %v119 = vld [vmem:[%s3 + $0x18] sm:$0xff]
  %v120 = vld [vmem:[%s3 + $0x20] sm:$0xff]
  %v121 = vld [vmem:[%s3 + $0x28] sm:$0xff]
  %v122 = vld [vmem:[%s3 + $0x30] sm:$0xff]
  %v123 = vld [vmem:[%s3 + $0x38] sm:$0xff]
  %v124 = vld [vmem:[%s3 + $0x40] sm:$0xff]
  %v125 = vld [vmem:[%s3 + $0x48] sm:$0xff]
  %v126 = vld [vmem:[%s3 + $0x50] sm:$0xff]
  %v127 = vld [vmem:[%s3 + $0x58] sm:$0xff]
  %v128 = vld [vmem:[%s3 + $0x60] sm:$0xff]
  %v129 = vld [vmem:[%s3 + $0x68] sm:$0xff]
  %v130 = vld [vmem:[%s3 + $0x70] sm:$0xff]
  %v131 = vld [vmem:[%s3 + $0x78] sm:$0xff]
  %v132 = vld [vmem:[%s4] sm:$0x3]
  %v134 = vlaneseq
  %v135 = vshrl.u32 %v134, 7
  %v136 = vsub.s32 0, %v135
  %v137 = vrot.slane %v132, %v136
  %v138 = vlaneseq
  %v139 = vshrl.u32 %v138, 7
  %v140 = vsub.s32 1, %v139
  %v141 = vrot.slane %v132, %v140
  %v160 = vunpack.c.l.b16 %v116
  %v161 = vunpack.c.h.b16 %v116
  %v162 = vunpack.c.l.b16 %v117
  %v163 = vunpack.c.h.b16 %v117
  %v164 = vunpack.c.l.b16 %v118
  %v165 = vunpack.c.h.b16 %v118
  %v166 = vunpack.c.l.b16 %v119
  %v167 = vunpack.c.h.b16 %v119
  %v168 = vunpack.c.l.b16 %v120
  %v169 = vunpack.c.h.b16 %v120
  %v170 = vunpack.c.l.b16 %v121
  %v171 = vunpack.c.h.b16 %v121
  %v172 = vunpack.c.l.b16 %v122
  %v173 = vunpack.c.h.b16 %v122
  %v174 = vunpack.c.l.b16 %v123
  %v175 = vunpack.c.h.b16 %v123
  %v176 = vunpack.c.l.b16 %v124
  %v177 = vunpack.c.h.b16 %v124
  %v178 = vunpack.c.l.b16 %v125
  %v179 = vunpack.c.h.b16 %v125
  %v180 = vunpack.c.l.b16 %v126
  %v181 = vunpack.c.h.b16 %v126
  %v182 = vunpack.c.l.b16 %v127
  %v183 = vunpack.c.h.b16 %v127
  %v184 = vunpack.c.l.b16 %v128
  %v185 = vunpack.c.h.b16 %v128
  %v186 = vunpack.c.l.b16 %v129
  %v187 = vunpack.c.h.b16 %v129
  %v188 = vunpack.c.l.b16 %v130
  %v189 = vunpack.c.h.b16 %v130
  %v190 = vunpack.c.l.b16 %v131
  %v191 = vunpack.c.h.b16 %v131
  %v192 = vpack.c.b16 %v162, %v160
  %v193 = vpack.c.b16 %v163, %v161
  %v194 = vpack.c.b16 %v166, %v164
  %v195 = vpack.c.b16 %v167, %v165
  %v196 = vpack.c.b16 %v170, %v168
  %v197 = vpack.c.b16 %v171, %v169
  %v198 = vpack.c.b16 %v174, %v172
  %v199 = vpack.c.b16 %v175, %v173
  %v200 = vpack.c.b16 %v178, %v176
  %v201 = vpack.c.b16 %v179, %v177
  %v202 = vpack.c.b16 %v182, %v180
  %v203 = vpack.c.b16 %v183, %v181
  %v204 = vpack.c.b16 %v186, %v184
  %v205 = vpack.c.b16 %v187, %v185
  %v206 = vpack.c.b16 %v190, %v188
  %v207 = vpack.c.b16 %v191, %v189
  %224 = vmatprep.subr.bf16.mxu0 %v193
  %225 = vmatpush1.bf16.msra.mxu0 %v192
  %226 = vmatprep.subr.bf16.mxu0 %v195
  %227 = vmatpush1.bf16.msra.mxu0 %v194
  %228 = vmatprep.subr.bf16.mxu0 %v197
  %229 = vmatpush1.bf16.msra.mxu0 %v196
  %230 = vmatprep.subr.bf16.mxu0 %v199
  %231 = vmatpush1.bf16.msra.mxu0 %v198
  %232 = vmatprep.subr.bf16.mxu0 %v201
  %233 = vmatpush1.bf16.msra.mxu0 %v200
  %234 = vmatprep.subr.bf16.mxu0 %v203
  %235 = vmatpush1.bf16.msra.mxu0 %v202
  %236 = vmatprep.subr.bf16.mxu0 %v205
  %237 = vmatpush1.bf16.msra.mxu0 %v204
  %238 = vmatprep.subr.bf16.mxu0 %v207
  %239 = vmatpush1.bf16.msra.mxu0 %v206
  %240 = vmatprep.subr.bf16.mxu0 0
  %241 = vmatpush1.bf16.msra.mxu0 0
  %242 = vmatprep.subr.bf16.mxu0 0
  %243 = vmatpush1.bf16.msra.mxu0 0
  %244 = vmatprep.subr.bf16.mxu0 0
  %245 = vmatpush1.bf16.msra.mxu0 0
  %246 = vmatprep.subr.bf16.mxu0 0
  %247 = vmatpush1.bf16.msra.mxu0 0
  %248 = vmatprep.subr.bf16.mxu0 0
  %249 = vmatpush1.bf16.msra.mxu0 0
  %250 = vmatprep.subr.bf16.mxu0 0
  %251 = vmatpush1.bf16.msra.mxu0 0
  %252 = vmatprep.subr.bf16.mxu0 0
  %253 = vmatpush1.bf16.msra.mxu0 0
  %254 = vmatprep.subr.bf16.mxu0 0
  %255 = vmatpush1.bf16.msra.mxu0 0
  %256 = vmatprep.mubr.bf16.mxu0 0
  %257 = vmatmul.mubr.bf16.gmra.mrb[0].mxu0 %v115
  %v258 = vpop.f32.mrb[0].mxu0
  %v259 = vadd.f32 %v137, %v258
  %v260 = vpop.f32.mrb[0].mxu0
  %v261 = vadd.f32 %v141, %v260
  %v262 = vpop.f32.mrb[0].mxu0
  %v263 = vadd.f32 %v137, %v262
  %v264 = vpop.f32.mrb[0].mxu0
  %v265 = vadd.f32 %v141, %v264
  %266 = vdwg.mxu0
  %v267 = vmax.f32 %v259, 0.0
  %v268 = vmax.f32 %v261, 0.0
  %v269 = vmax.f32 %v263, 0.0
  %v270 = vmax.f32 %v265, 0.0
  %v271 = vpack.c.bf16 %v269, %v267
  %v272 = vpack.c.bf16 %v270, %v268
  %v273 = vld [vmem:[%s5] sm:$0xff]
  %v274 = vld [vmem:[%s5 + $0x8] sm:$0xff]
  %v275 = vld [vmem:[%s5 + $0x10] sm:$0xff]
  %v276 = vld [vmem:[%s5 + $0x18] sm:$0xff]
  %v277 = vld [vmem:[%s5 + $0x20] sm:$0xff]
  %v278 = vld [vmem:[%s5 + $0x28] sm:$0xff]
  %v279 = vld [vmem:[%s5 + $0x30] sm:$0xff]
  %v280 = vld [vmem:[%s5 + $0x38] sm:$0xff]
  %v281 = vld [vmem:[%s5 + $0x40] sm:$0xff]
  %v282 = vld [vmem:[%s5 + $0x48] sm:$0xff]
  %v283 = vld [vmem:[%s5 + $0x50] sm:$0xff]
  %v284 = vld [vmem:[%s5 + $0x58] sm:$0xff]
  %v285 = vld [vmem:[%s5 + $0x60] sm:$0xff]
  %v286 = vld [vmem:[%s5 + $0x68] sm:$0xff]
  %v287 = vld [vmem:[%s5 + $0x70] sm:$0xff]
  %v288 = vld [vmem:[%s5 + $0x78] sm:$0xff]
  %v289 = vld [vmem:[%s5 + $0x80] sm:$0xff]
  %v290 = vld [vmem:[%s5 + $0x88] sm:$0xff]
  %v291 = vld [vmem:[%s5 + $0x90] sm:$0xff]
  %v292 = vld [vmem:[%s5 + $0x98] sm:$0xff]
  %v293 = vld [vmem:[%s5 + $0xa0] sm:$0xff]
  %v294 = vld [vmem:[%s5 + $0xa8] sm:$0xff]
  %v295 = vld [vmem:[%s5 + $0xb0] sm:$0xff]
  %v296 = vld [vmem:[%s5 + $0xb8] sm:$0xff]
  %v297 = vld [vmem:[%s5 + $0xc0] sm:$0xff]
  %v298 = vld [vmem:[%s5 + $0xc8] sm:$0xff]
  %v299 = vld [vmem:[%s5 + $0xd0] sm:$0xff]
  %v300 = vld [vmem:[%s5 + $0xd8] sm:$0xff]
  %v301 = vld [vmem:[%s5 + $0xe0] sm:$0xff]
  %v302 = vld [vmem:[%s5 + $0xe8] sm:$0xff]
  %v303 = vld [vmem:[%s5 + $0xf0] sm:$0xff]
  %v304 = vld [vmem:[%s5 + $0xf8] sm:$0xff]
  %v305 = vld [vmem:[%s5 + $0x100] sm:$0xff]
  %v306 = vld [vmem:[%s5 + $0x108] sm:$0xff]
  %v307 = vld [vmem:[%s5 + $0x110] sm:$0xff]
  %v308 = vld [vmem:[%s5 + $0x118] sm:$0xff]
  %v309 = vld [vmem:[%s5 + $0x120] sm:$0xff]
  %v310 = vld [vmem:[%s5 + $0x128] sm:$0xff]
  %v311 = vld [vmem:[%s5 + $0x130] sm:$0xff]
  %v312 = vld [vmem:[%s5 + $0x138] sm:$0xff]
  %v313 = vld [vmem:[%s5 + $0x140] sm:$0xff]
  %v314 = vld [vmem:[%s5 + $0x148] sm:$0xff]
  %v315 = vld [vmem:[%s5 + $0x150] sm:$0xff]
  %v316 = vld [vmem:[%s5 + $0x158] sm:$0xff]
  %v317 = vld [vmem:[%s5 + $0x160] sm:$0xff]
  %v318 = vld [vmem:[%s5 + $0x168] sm:$0xff]
  %v319 = vld [vmem:[%s5 + $0x170] sm:$0xff]
  %v320 = vld [vmem:[%s5 + $0x178] sm:$0xff]
  %v321 = vld [vmem:[%s5 + $0x180] sm:$0xff]
  %v322 = vld [vmem:[%s5 + $0x188] sm:$0xff]
  %v323 = vld [vmem:[%s5 + $0x190] sm:$0xff]
  %v324 = vld [vmem:[%s5 + $0x198] sm:$0xff]
  %v325 = vld [vmem:[%s5 + $0x1a0] sm:$0xff]
  %v326 = vld [vmem:[%s5 + $0x1a8] sm:$0xff]
  %v327 = vld [vmem:[%s5 + $0x1b0] sm:$0xff]
  %v328 = vld [vmem:[%s5 + $0x1b8] sm:$0xff]
  %v329 = vld [vmem:[%s5 + $0x1c0] sm:$0xff]
  %v330 = vld [vmem:[%s5 + $0x1c8] sm:$0xff]
  %v331 = vld [vmem:[%s5 + $0x1d0] sm:$0xff]
  %v332 = vld [vmem:[%s5 + $0x1d8] sm:$0xff]
  %v333 = vld [vmem:[%s5 + $0x1e0] sm:$0xff]
  %v334 = vld [vmem:[%s5 + $0x1e8] sm:$0xff]
  %v335 = vld [vmem:[%s5 + $0x1f0] sm:$0xff]
  %v336 = vld [vmem:[%s5 + $0x1f8] sm:$0xff]
  %v337 = vld [vmem:[%s6] sm:$0xf]
  %v339 = vlaneseq
  %v340 = vshrl.u32 %v339, 7
  %v341 = vsub.s32 0, %v340
  %v342 = vrot.slane %v337, %v341
  %v343 = vlaneseq
  %v344 = vshrl.u32 %v343, 7
  %v345 = vsub.s32 1, %v344
  %v346 = vrot.slane %v337, %v345
  %v347 = vlaneseq
  %v348 = vshrl.u32 %v347, 7
  %v349 = vsub.s32 2, %v348
  %v350 = vrot.slane %v337, %v349
  %v351 = vlaneseq
  %v352 = vshrl.u32 %v351, 7
  %v353 = vsub.s32 3, %v352
  %v354 = vrot.slane %v337, %v353
  %v423 = vunpack.c.l.b16 %v273
  %v424 = vunpack.c.h.b16 %v273
  %v425 = vunpack.c.l.b16 %v274
  %v426 = vunpack.c.h.b16 %v274
  %v427 = vunpack.c.l.b16 %v275
  %v428 = vunpack.c.h.b16 %v275
  %v429 = vunpack.c.l.b16 %v276
  %v430 = vunpack.c.h.b16 %v276
  %v431 = vunpack.c.l.b16 %v277
  %v432 = vunpack.c.h.b16 %v277
  %v433 = vunpack.c.l.b16 %v278
  %v434 = vunpack.c.h.b16 %v278
  %v435 = vunpack.c.l.b16 %v279
  %v436 = vunpack.c.h.b16 %v279
  %v437 = vunpack.c.l.b16 %v280
  %v438 = vunpack.c.h.b16 %v280
  %v439 = vunpack.c.l.b16 %v281
  %v440 = vunpack.c.h.b16 %v281
  %v441 = vunpack.c.l.b16 %v282
  %v442 = vunpack.c.h.b16 %v282
  %v443 = vunpack.c.l.b16 %v283
  %v444 = vunpack.c.h.b16 %v283
  %v445 = vunpack.c.l.b16 %v284
  %v446 = vunpack.c.h.b16 %v284
  %v447 = vunpack.c.l.b16 %v285
  %v448 = vunpack.c.h.b16 %v285
  %v449 = vunpack.c.l.b16 %v286
  %v450 = vunpack.c.h.b16 %v286
  %v451 = vunpack.c.l.b16 %v287
  %v452 = vunpack.c.h.b16 %v287
  %v453 = vunpack.c.l.b16 %v288
  %v454 = vunpack.c.h.b16 %v288
  %v455 = vunpack.c.l.b16 %v289
  %v456 = vunpack.c.h.b16 %v289
  %v457 = vunpack.c.l.b16 %v290
  %v458 = vunpack.c.h.b16 %v290
  %v459 = vunpack.c.l.b16 %v291
  %v460 = vunpack.c.h.b16 %v291
  %v461 = vunpack.c.l.b16 %v292
  %v462 = vunpack.c.h.b16 %v292
  %v463 = vunpack.c.l.b16 %v293
  %v464 = vunpack.c.h.b16 %v293
  %v465 = vunpack.c.l.b16 %v294
  %v466 = vunpack.c.h.b16 %v294
  %v467 = vunpack.c.l.b16 %v295
  %v468 = vunpack.c.h.b16 %v295
  %v469 = vunpack.c.l.b16 %v296
  %v470 = vunpack.c.h.b16 %v296
  %v471 = vunpack.c.l.b16 %v297
  %v472 = vunpack.c.h.b16 %v297
  %v473 = vunpack.c.l.b16 %v298
  %v474 = vunpack.c.h.b16 %v298
  %v475 = vunpack.c.l.b16 %v299
  %v476 = vunpack.c.h.b16 %v299
  %v477 = vunpack.c.l.b16 %v300
  %v478 = vunpack.c.h.b16 %v300
  %v479 = vunpack.c.l.b16 %v301
  %v480 = vunpack.c.h.b16 %v301
  %v481 = vunpack.c.l.b16 %v302
  %v482 = vunpack.c.h.b16 %v302
  %v483 = vunpack.c.l.b16 %v303
  %v484 = vunpack.c.h.b16 %v303
  %v485 = vunpack.c.l.b16 %v304
  %v486 = vunpack.c.h.b16 %v304
  %v487 = vunpack.c.l.b16 %v305
  %v488 = vunpack.c.h.b16 %v305
  %v489 = vunpack.c.l.b16 %v306
  %v490 = vunpack.c.h.b16 %v306
  %v491 = vunpack.c.l.b16 %v307
  %v492 = vunpack.c.h.b16 %v307
  %v493 = vunpack.c.l.b16 %v308
  %v494 = vunpack.c.h.b16 %v308
  %v495 = vunpack.c.l.b16 %v309
  %v496 = vunpack.c.h.b16 %v309
  %v497 = vunpack.c.l.b16 %v310
  %v498 = vunpack.c.h.b16 %v310
  %v499 = vunpack.c.l.b16 %v311
  %v500 = vunpack.c.h.b16 %v311
  %v501 = vunpack.c.l.b16 %v312
  %v502 = vunpack.c.h.b16 %v312
  %v503 = vunpack.c.l.b16 %v313
  %v504 = vunpack.c.h.b16 %v313
  %v505 = vunpack.c.l.b16 %v314
  %v506 = vunpack.c.h.b16 %v314
  %v507 = vunpack.c.l.b16 %v315
  %v508 = vunpack.c.h.b16 %v315
  %v509 = vunpack.c.l.b16 %v316
  %v510 = vunpack.c.h.b16 %v316
  %v511 = vunpack.c.l.b16 %v317
  %v512 = vunpack.c.h.b16 %v317
  %v513 = vunpack.c.l.b16 %v318
  %v514 = vunpack.c.h.b16 %v318
  %v515 = vunpack.c.l.b16 %v319
  %v516 = vunpack.c.h.b16 %v319
  %v517 = vunpack.c.l.b16 %v320
  %v518 = vunpack.c.h.b16 %v320
  %v519 = vunpack.c.l.b16 %v321
  %v520 = vunpack.c.h.b16 %v321
  %v521 = vunpack.c.l.b16 %v322
  %v522 = vunpack.c.h.b16 %v322
  %v523 = vunpack.c.l.b16 %v323
  %v524 = vunpack.c.h.b16 %v323
  %v525 = vunpack.c.l.b16 %v324
  %v526 = vunpack.c.h.b16 %v324
  %v527 = vunpack.c.l.b16 %v325
  %v528 = vunpack.c.h.b16 %v325
  %v529 = vunpack.c.l.b16 %v326
  %v530 = vunpack.c.h.b16 %v326
  %v531 = vunpack.c.l.b16 %v327
  %v532 = vunpack.c.h.b16 %v327
  %v533 = vunpack.c.l.b16 %v328
  %v534 = vunpack.c.h.b16 %v328
  %v535 = vunpack.c.l.b16 %v329
  %v536 = vunpack.c.h.b16 %v329
  %v537 = vunpack.c.l.b16 %v330
  %v538 = vunpack.c.h.b16 %v330
  %v539 = vunpack.c.l.b16 %v331
  %v540 = vunpack.c.h.b16 %v331
  %v541 = vunpack.c.l.b16 %v332
  %v542 = vunpack.c.h.b16 %v332
  %v543 = vunpack.c.l.b16 %v333
  %v544 = vunpack.c.h.b16 %v333
  %v545 = vunpack.c.l.b16 %v334
  %v546 = vunpack.c.h.b16 %v334
  %v547 = vunpack.c.l.b16 %v335
  %v548 = vunpack.c.h.b16 %v335
  %v549 = vunpack.c.l.b16 %v336
  %v550 = vunpack.c.h.b16 %v336
  %v551 = vpack.c.b16 %v427, %v423
  %v552 = vpack.c.b16 %v428, %v424
  %v553 = vpack.c.b16 %v429, %v425
  %v554 = vpack.c.b16 %v430, %v426
  %v555 = vpack.c.b16 %v435, %v431
  %v556 = vpack.c.b16 %v436, %v432
  %v557 = vpack.c.b16 %v437, %v433
  %v558 = vpack.c.b16 %v438, %v434
  %v559 = vpack.c.b16 %v443, %v439
  %v560 = vpack.c.b16 %v444, %v440
  %v561 = vpack.c.b16 %v445, %v441
  %v562 = vpack.c.b16 %v446, %v442
  %v563 = vpack.c.b16 %v451, %v447
  %v564 = vpack.c.b16 %v452, %v448
  %v565 = vpack.c.b16 %v453, %v449
  %v566 = vpack.c.b16 %v454, %v450
  %v567 = vpack.c.b16 %v459, %v455
  %v568 = vpack.c.b16 %v460, %v456
  %v569 = vpack.c.b16 %v461, %v457
  %v570 = vpack.c.b16 %v462, %v458
  %v571 = vpack.c.b16 %v467, %v463
  %v572 = vpack.c.b16 %v468, %v464
  %v573 = vpack.c.b16 %v469, %v465
  %v574 = vpack.c.b16 %v470, %v466
  %v575 = vpack.c.b16 %v475, %v471
  %v576 = vpack.c.b16 %v476, %v472
  %v577 = vpack.c.b16 %v477, %v473
  %v578 = vpack.c.b16 %v478, %v474
  %v579 = vpack.c.b16 %v483, %v479
  %v580 = vpack.c.b16 %v484, %v480
  %v581 = vpack.c.b16 %v485, %v481
  %v582 = vpack.c.b16 %v486, %v482
  %v583 = vpack.c.b16 %v491, %v487
  %v584 = vpack.c.b16 %v492, %v488
  %v585 = vpack.c.b16 %v493, %v489
  %v586 = vpack.c.b16 %v494, %v490
  %v587 = vpack.c.b16 %v499, %v495
  %v588 = vpack.c.b16 %v500, %v496
  %v589 = vpack.c.b16 %v501, %v497
  %v590 = vpack.c.b16 %v502, %v498
  %v591 = vpack.c.b16 %v507, %v503
  %v592 = vpack.c.b16 %v508, %v504
  %v593 = vpack.c.b16 %v509, %v505
  %v594 = vpack.c.b16 %v510, %v506
  %v595 = vpack.c.b16 %v515, %v511
  %v596 = vpack.c.b16 %v516, %v512
  %v597 = vpack.c.b16 %v517, %v513
  %v598 = vpack.c.b16 %v518, %v514
  %v599 = vpack.c.b16 %v523, %v519
  %v600 = vpack.c.b16 %v524, %v520
  %v601 = vpack.c.b16 %v525, %v521
  %v602 = vpack.c.b16 %v526, %v522
  %v603 = vpack.c.b16 %v531, %v527
  %v604 = vpack.c.b16 %v532, %v528
  %v605 = vpack.c.b16 %v533, %v529
  %v606 = vpack.c.b16 %v534, %v530
  %v607 = vpack.c.b16 %v539, %v535
  %v608 = vpack.c.b16 %v540, %v536
  %v609 = vpack.c.b16 %v541, %v537
  %v610 = vpack.c.b16 %v542, %v538
  %v611 = vpack.c.b16 %v547, %v543
  %v612 = vpack.c.b16 %v548, %v544
  %v613 = vpack.c.b16 %v549, %v545
  %v614 = vpack.c.b16 %v550, %v546
  %679 = vmatprep.subr.bf16.mxu0 %v552
  %680 = vmatpush1.bf16.msra.mxu0 %v551
  %681 = vmatprep.subr.bf16.mxu0 %v556
  %682 = vmatpush1.bf16.msra.mxu0 %v555
  %683 = vmatprep.subr.bf16.mxu0 %v560
  %684 = vmatpush1.bf16.msra.mxu0 %v559
  %685 = vmatprep.subr.bf16.mxu0 %v564
  %686 = vmatpush1.bf16.msra.mxu0 %v563
  %687 = vmatprep.subr.bf16.mxu0 %v568
  %688 = vmatpush1.bf16.msra.mxu0 %v567
  %689 = vmatprep.subr.bf16.mxu0 %v572
  %690 = vmatpush1.bf16.msra.mxu0 %v571
  %691 = vmatprep.subr.bf16.mxu0 %v576
  %692 = vmatpush1.bf16.msra.mxu0 %v575
  %693 = vmatprep.subr.bf16.mxu0 %v580
  %694 = vmatpush1.bf16.msra.mxu0 %v579
  %695 = vmatprep.subr.bf16.mxu0 %v584
  %696 = vmatpush1.bf16.msra.mxu0 %v583
  %697 = vmatprep.subr.bf16.mxu0 %v588
  %698 = vmatpush1.bf16.msra.mxu0 %v587
  %699 = vmatprep.subr.bf16.mxu0 %v592
  %700 = vmatpush1.bf16.msra.mxu0 %v591
  %701 = vmatprep.subr.bf16.mxu0 %v596
  %702 = vmatpush1.bf16.msra.mxu0 %v595
  %703 = vmatprep.subr.bf16.mxu0 %v600
  %704 = vmatpush1.bf16.msra.mxu0 %v599
  %705 = vmatprep.subr.bf16.mxu0 %v604
  %706 = vmatpush1.bf16.msra.mxu0 %v603
  %707 = vmatprep.subr.bf16.mxu0 %v608
  %708 = vmatpush1.bf16.msra.mxu0 %v607
  %709 = vmatprep.subr.bf16.mxu0 %v612
  %710 = vmatpush1.bf16.msra.mxu0 %v611
  %711 = vmatprep.mubr.bf16.mxu0 %v272
  %712 = vmatmul.mubr.bf16.gmra.mrb[0].mxu0 %v271
  %v713 = vpop.f32.mrb[0].mxu0
  %v714 = vadd.f32 %v342, %v713
  %v715 = vpop.f32.mrb[0].mxu0
  %v716 = vadd.f32 %v346, %v715
  %v717 = vpop.f32.mrb[0].mxu0
  %v718 = vadd.f32 %v342, %v717
  %v719 = vpop.f32.mrb[0].mxu0
  %v720 = vadd.f32 %v346, %v719
  %721 = vdwg.mxu0
  %722 = vmatprep.subr.bf16.mxu0 %v554
  %723 = vmatpush1.bf16.msra.mxu0 %v553
  %724 = vmatprep.subr.bf16.mxu0 %v558
  %725 = vmatpush1.bf16.msra.mxu0 %v557
  %726 = vmatprep.subr.bf16.mxu0 %v562
  %727 = vmatpush1.bf16.msra.mxu0 %v561
  %728 = vmatprep.subr.bf16.mxu0 %v566
  %729 = vmatpush1.bf16.msra.mxu0 %v565
  %730 = vmatprep.subr.bf16.mxu0 %v570
  %731 = vmatpush1.bf16.msra.mxu0 %v569
  %732 = vmatprep.subr.bf16.mxu0 %v574
  %733 = vmatpush1.bf16.msra.mxu0 %v573
  %734 = vmatprep.subr.bf16.mxu0 %v578
  %735 = vmatpush1.bf16.msra.mxu0 %v577
  %736 = vmatprep.subr.bf16.mxu0 %v582
  %737 = vmatpush1.bf16.msra.mxu0 %v581
  %738 = vmatprep.subr.bf16.mxu0 %v586
  %739 = vmatpush1.bf16.msra.mxu0 %v585
  %740 = vmatprep.subr.bf16.mxu0 %v590
  %741 = vmatpush1.bf16.msra.mxu0 %v589
  %742 = vmatprep.subr.bf16.mxu0 %v594
  %743 = vmatpush1.bf16.msra.mxu0 %v593
  %744 = vmatprep.subr.bf16.mxu0 %v598
  %745 = vmatpush1.bf16.msra.mxu0 %v597
  %746 = vmatprep.subr.bf16.mxu0 %v602
  %747 = vmatpush1.bf16.msra.mxu0 %v601
  %748 = vmatprep.subr.bf16.mxu0 %v606
  %749 = vmatpush1.bf16.msra.mxu0 %v605
  %750 = vmatprep.subr.bf16.mxu0 %v610
  %751 = vmatpush1.bf16.msra.mxu0 %v609
  %752 = vmatprep.subr.bf16.mxu0 %v614
  %753 = vmatpush1.bf16.msra.mxu0 %v613
  %754 = vmatprep.mubr.bf16.mxu0 %v272
  %755 = vmatmul.mubr.bf16.gmra.mrb[0].mxu0 %v271
  %v756 = vpop.f32.mrb[0].mxu0
  %v757 = vadd.f32 %v350, %v756
  %v758 = vpop.f32.mrb[0].mxu0
  %v759 = vadd.f32 %v354, %v758
  %v760 = vpop.f32.mrb[0].mxu0
  %v761 = vadd.f32 %v350, %v760
  %v762 = vpop.f32.mrb[0].mxu0
  %v763 = vadd.f32 %v354, %v762
  %764 = vdwg.mxu0
  %v765 = vmax.f32 %v714, 0.0
  %v766 = vmax.f32 %v716, 0.0
  %v767 = vmax.f32 %v757, 0.0
  %v768 = vmax.f32 %v759, 0.0
  %v769 = vmax.f32 %v718, 0.0
  %v770 = vmax.f32 %v720, 0.0
  %v771 = vmax.f32 %v761, 0.0
  %v772 = vmax.f32 %v763, 0.0
  %v773 = vpack.c.bf16 %v769, %v765
  %v774 = vpack.c.bf16 %v770, %v766
  %v775 = vpack.c.bf16 %v771, %v767
  %v776 = vpack.c.bf16 %v772, %v768
  %v777 = vld [vmem:[%s7] sm:$0xff]
  %v778 = vld [vmem:[%s7 + $0x8] sm:$0xff]
  %v779 = vld [vmem:[%s7 + $0x10] sm:$0xff]
  %v780 = vld [vmem:[%s7 + $0x18] sm:$0xff]
  %v781 = vld [vmem:[%s7 + $0x20] sm:$0xff]
  %v782 = vld [vmem:[%s7 + $0x28] sm:$0xff]
  %v783 = vld [vmem:[%s7 + $0x30] sm:$0xff]
  %v784 = vld [vmem:[%s7 + $0x38] sm:$0xff]
  %v785 = vld [vmem:[%s7 + $0x40] sm:$0xff]
  %v786 = vld [vmem:[%s7 + $0x48] sm:$0xff]
  %v787 = vld [vmem:[%s7 + $0x50] sm:$0xff]
  %v788 = vld [vmem:[%s7 + $0x58] sm:$0xff]
  %v789 = vld [vmem:[%s7 + $0x60] sm:$0xff]
  %v790 = vld [vmem:[%s7 + $0x68] sm:$0xff]
  %v791 = vld [vmem:[%s7 + $0x70] sm:$0xff]
  %v792 = vld [vmem:[%s7 + $0x78] sm:$0xff]
  %v793 = vld [vmem:[%s7 + $0x80] sm:$0xff]
  %v794 = vld [vmem:[%s7 + $0x88] sm:$0xff]
  %v795 = vld [vmem:[%s7 + $0x90] sm:$0xff]
  %v796 = vld [vmem:[%s7 + $0x98] sm:$0xff]
  %v797 = vld [vmem:[%s7 + $0xa0] sm:$0xff]
  %v798 = vld [vmem:[%s7 + $0xa8] sm:$0xff]
  %v799 = vld [vmem:[%s7 + $0xb0] sm:$0xff]
  %v800 = vld [vmem:[%s7 + $0xb8] sm:$0xff]
  %v801 = vld [vmem:[%s7 + $0xc0] sm:$0xff]
  %v802 = vld [vmem:[%s7 + $0xc8] sm:$0xff]
  %v803 = vld [vmem:[%s7 + $0xd0] sm:$0xff]
  %v804 = vld [vmem:[%s7 + $0xd8] sm:$0xff]
  %v805 = vld [vmem:[%s7 + $0xe0] sm:$0xff]
  %v806 = vld [vmem:[%s7 + $0xe8] sm:$0xff]
  %v807 = vld [vmem:[%s7 + $0xf0] sm:$0xff]
  %v808 = vld [vmem:[%s7 + $0xf8] sm:$0xff]
  %v809 = vld [vmem:[%s7 + $0x100] sm:$0xff]
  %v810 = vld [vmem:[%s7 + $0x108] sm:$0xff]
  %v811 = vld [vmem:[%s7 + $0x110] sm:$0xff]
  %v812 = vld [vmem:[%s7 + $0x118] sm:$0xff]
  %v813 = vld [vmem:[%s7 + $0x120] sm:$0xff]
  %v814 = vld [vmem:[%s7 + $0x128] sm:$0xff]
  %v815 = vld [vmem:[%s7 + $0x130] sm:$0xff]
  %v816 = vld [vmem:[%s7 + $0x138] sm:$0xff]
  %v817 = vld [vmem:[%s7 + $0x140] sm:$0xff]
  %v818 = vld [vmem:[%s7 + $0x148] sm:$0xff]
  %v819 = vld [vmem:[%s7 + $0x150] sm:$0xff]
  %v820 = vld [vmem:[%s7 + $0x158] sm:$0xff]
  %v821 = vld [vmem:[%s7 + $0x160] sm:$0xff]
  %v822 = vld [vmem:[%s7 + $0x168] sm:$0xff]
  %v823 = vld [vmem:[%s7 + $0x170] sm:$0xff]
  %v824 = vld [vmem:[%s7 + $0x178] sm:$0xff]
  %v825 = vld [vmem:[%s7 + $0x180] sm:$0xff]
  %v826 = vld [vmem:[%s7 + $0x188] sm:$0xff]
  %v827 = vld [vmem:[%s7 + $0x190] sm:$0xff]
  %v828 = vld [vmem:[%s7 + $0x198] sm:$0xff]
  %v829 = vld [vmem:[%s7 + $0x1a0] sm:$0xff]
  %v830 = vld [vmem:[%s7 + $0x1a8] sm:$0xff]
  %v831 = vld [vmem:[%s7 + $0x1b0] sm:$0xff]
  %v832 = vld [vmem:[%s7 + $0x1b8] sm:$0xff]
  %v833 = vld [vmem:[%s7 + $0x1c0] sm:$0xff]
  %v834 = vld [vmem:[%s7 + $0x1c8] sm:$0xff]
  %v835 = vld [vmem:[%s7 + $0x1d0] sm:$0xff]
  %v836 = vld [vmem:[%s7 + $0x1d8] sm:$0xff]
  %v837 = vld [vmem:[%s7 + $0x1e0] sm:$0xff]
  %v838 = vld [vmem:[%s7 + $0x1e8] sm:$0xff]
  %v839 = vld [vmem:[%s7 + $0x1f0] sm:$0xff]
  %v840 = vld [vmem:[%s7 + $0x1f8] sm:$0xff]
  %v841 = vld [vmem:[%s8] sm:$0x3]
  %v843 = vlaneseq
  %v844 = vshrl.u32 %v843, 7
  %v845 = vsub.s32 0, %v844
  %v846 = vrot.slane %v841, %v845
  %v847 = vlaneseq
  %v848 = vshrl.u32 %v847, 7
  %v849 = vsub.s32 1, %v848
  %v850 = vrot.slane %v841, %v849
  %v917 = vunpack.c.l.b16 %v777
  %v918 = vunpack.c.h.b16 %v777
  %v919 = vunpack.c.l.b16 %v778
  %v920 = vunpack.c.h.b16 %v778
  %v921 = vunpack.c.l.b16 %v779
  %v922 = vunpack.c.h.b16 %v779
  %v923 = vunpack.c.l.b16 %v780
  %v924 = vunpack.c.h.b16 %v780
  %v925 = vunpack.c.l.b16 %v781
  %v926 = vunpack.c.h.b16 %v781
  %v927 = vunpack.c.l.b16 %v782
  %v928 = vunpack.c.h.b16 %v782
  %v929 = vunpack.c.l.b16 %v783
  %v930 = vunpack.c.h.b16 %v783
  %v931 = vunpack.c.l.b16 %v784
  %v932 = vunpack.c.h.b16 %v784
  %v933 = vunpack.c.l.b16 %v785
  %v934 = vunpack.c.h.b16 %v785
  %v935 = vunpack.c.l.b16 %v786
  %v936 = vunpack.c.h.b16 %v786
  %v937 = vunpack.c.l.b16 %v787
  %v938 = vunpack.c.h.b16 %v787
  %v939 = vunpack.c.l.b16 %v788
  %v940 = vunpack.c.h.b16 %v788
  %v941 = vunpack.c.l.b16 %v789
  %v942 = vunpack.c.h.b16 %v789
  %v943 = vunpack.c.l.b16 %v790
  %v944 = vunpack.c.h.b16 %v790
  %v945 = vunpack.c.l.b16 %v791
  %v946 = vunpack.c.h.b16 %v791
  %v947 = vunpack.c.l.b16 %v792
  %v948 = vunpack.c.h.b16 %v792
  %v949 = vunpack.c.l.b16 %v793
  %v950 = vunpack.c.h.b16 %v793
  %v951 = vunpack.c.l.b16 %v794
  %v952 = vunpack.c.h.b16 %v794
  %v953 = vunpack.c.l.b16 %v795
  %v954 = vunpack.c.h.b16 %v795
  %v955 = vunpack.c.l.b16 %v796
  %v956 = vunpack.c.h.b16 %v796
  %v957 = vunpack.c.l.b16 %v797
  %v958 = vunpack.c.h.b16 %v797
  %v959 = vunpack.c.l.b16 %v798
  %v960 = vunpack.c.h.b16 %v798
  %v961 = vunpack.c.l.b16 %v799
  %v962 = vunpack.c.h.b16 %v799
  %v963 = vunpack.c.l.b16 %v800
  %v964 = vunpack.c.h.b16 %v800
  %v965 = vunpack.c.l.b16 %v801
  %v966 = vunpack.c.h.b16 %v801
  %v967 = vunpack.c.l.b16 %v802
  %v968 = vunpack.c.h.b16 %v802
  %v969 = vunpack.c.l.b16 %v803
  %v970 = vunpack.c.h.b16 %v803
  %v971 = vunpack.c.l.b16 %v804
  %v972 = vunpack.c.h.b16 %v804
  %v973 = vunpack.c.l.b16 %v805
  %v974 = vunpack.c.h.b16 %v805
  %v975 = vunpack.c.l.b16 %v806
  %v976 = vunpack.c.h.b16 %v806
  %v977 = vunpack.c.l.b16 %v807
  %v978 = vunpack.c.h.b16 %v807
  %v979 = vunpack.c.l.b16 %v808
  %v980 = vunpack.c.h.b16 %v808
  %v981 = vunpack.c.l.b16 %v809
  %v982 = vunpack.c.h.b16 %v809
  %v983 = vunpack.c.l.b16 %v810
  %v984 = vunpack.c.h.b16 %v810
  %v985 = vunpack.c.l.b16 %v811
  %v986 = vunpack.c.h.b16 %v811
  %v987 = vunpack.c.l.b16 %v812
  %v988 = vunpack.c.h.b16 %v812
  %v989 = vunpack.c.l.b16 %v813
  %v990 = vunpack.c.h.b16 %v813
  %v991 = vunpack.c.l.b16 %v814
  %v992 = vunpack.c.h.b16 %v814
  %v993 = vunpack.c.l.b16 %v815
  %v994 = vunpack.c.h.b16 %v815
  %v995 = vunpack.c.l.b16 %v816
  %v996 = vunpack.c.h.b16 %v816
  %v997 = vunpack.c.l.b16 %v817
  %v998 = vunpack.c.h.b16 %v817
  %v999 = vunpack.c.l.b16 %v818
  %v1000 = vunpack.c.h.b16 %v818
  %v1001 = vunpack.c.l.b16 %v819
  %v1002 = vunpack.c.h.b16 %v819
  %v1003 = vunpack.c.l.b16 %v820
  %v1004 = vunpack.c.h.b16 %v820
  %v1005 = vunpack.c.l.b16 %v821
  %v1006 = vunpack.c.h.b16 %v821
  %v1007 = vunpack.c.l.b16 %v822
  %v1008 = vunpack.c.h.b16 %v822
  %v1009 = vunpack.c.l.b16 %v823
  %v1010 = vunpack.c.h.b16 %v823
  %v1011 = vunpack.c.l.b16 %v824
  %v1012 = vunpack.c.h.b16 %v824
  %v1013 = vunpack.c.l.b16 %v825
  %v1014 = vunpack.c.h.b16 %v825
  %v1015 = vunpack.c.l.b16 %v826
  %v1016 = vunpack.c.h.b16 %v826
  %v1017 = vunpack.c.l.b16 %v827
  %v1018 = vunpack.c.h.b16 %v827
  %v1019 = vunpack.c.l.b16 %v828
  %v1020 = vunpack.c.h.b16 %v828
  %v1021 = vunpack.c.l.b16 %v829
  %v1022 = vunpack.c.h.b16 %v829
  %v1023 = vunpack.c.l.b16 %v830
  %v1024 = vunpack.c.h.b16 %v830
  %v1025 = vunpack.c.l.b16 %v831
  %v1026 = vunpack.c.h.b16 %v831
  %v1027 = vunpack.c.l.b16 %v832
  %v1028 = vunpack.c.h.b16 %v832
  %v1029 = vunpack.c.l.b16 %v833
  %v1030 = vunpack.c.h.b16 %v833
  %v1031 = vunpack.c.l.b16 %v834
  %v1032 = vunpack.c.h.b16 %v834
  %v1033 = vunpack.c.l.b16 %v835
  %v1034 = vunpack.c.h.b16 %v835
  %v1035 = vunpack.c.l.b16 %v836
  %v1036 = vunpack.c.h.b16 %v836
  %v1037 = vunpack.c.l.b16 %v837
  %v1038 = vunpack.c.h.b16 %v837
  %v1039 = vunpack.c.l.b16 %v838
  %v1040 = vunpack.c.h.b16 %v838
  %v1041 = vunpack.c.l.b16 %v839
  %v1042 = vunpack.c.h.b16 %v839
  %v1043 = vunpack.c.l.b16 %v840
  %v1044 = vunpack.c.h.b16 %v840
  %v1045 = vpack.c.b16 %v919, %v917
  %v1046 = vpack.c.b16 %v920, %v918
  %v1047 = vpack.c.b16 %v923, %v921
  %v1048 = vpack.c.b16 %v924, %v922
  %v1049 = vpack.c.b16 %v927, %v925
  %v1050 = vpack.c.b16 %v928, %v926
  %v1051 = vpack.c.b16 %v931, %v929
  %v1052 = vpack.c.b16 %v932, %v930
  %v1053 = vpack.c.b16 %v935, %v933
  %v1054 = vpack.c.b16 %v936, %v934
  %v1055 = vpack.c.b16 %v939, %v937
  %v1056 = vpack.c.b16 %v940, %v938
  %v1057 = vpack.c.b16 %v943, %v941
  %v1058 = vpack.c.b16 %v944, %v942
  %v1059 = vpack.c.b16 %v947, %v945
  %v1060 = vpack.c.b16 %v948, %v946
  %v1061 = vpack.c.b16 %v951, %v949
  %v1062 = vpack.c.b16 %v952, %v950
  %v1063 = vpack.c.b16 %v955, %v953
  %v1064 = vpack.c.b16 %v956, %v954
  %v1065 = vpack.c.b16 %v959, %v957
  %v1066 = vpack.c.b16 %v960, %v958
  %v1067 = vpack.c.b16 %v963, %v961
  %v1068 = vpack.c.b16 %v964, %v962
  %v1069 = vpack.c.b16 %v967, %v965
  %v1070 = vpack.c.b16 %v968, %v966
  %v1071 = vpack.c.b16 %v971, %v969
  %v1072 = vpack.c.b16 %v972, %v970
  %v1073 = vpack.c.b16 %v975, %v973
  %v1074 = vpack.c.b16 %v976, %v974
  %v1075 = vpack.c.b16 %v979, %v977
  %v1076 = vpack.c.b16 %v980, %v978
  %v1077 = vpack.c.b16 %v983, %v981
  %v1078 = vpack.c.b16 %v984, %v982
  %v1079 = vpack.c.b16 %v987, %v985
  %v1080 = vpack.c.b16 %v988, %v986
  %v1081 = vpack.c.b16 %v991, %v989
  %v1082 = vpack.c.b16 %v992, %v990
  %v1083 = vpack.c.b16 %v995, %v993
  %v1084 = vpack.c.b16 %v996, %v994
  %v1085 = vpack.c.b16 %v999, %v997
  %v1086 = vpack.c.b16 %v1000, %v998
  %v1087 = vpack.c.b16 %v1003, %v1001
  %v1088 = vpack.c.b16 %v1004, %v1002
  %v1089 = vpack.c.b16 %v1007, %v1005
  %v1090 = vpack.c.b16 %v1008, %v1006
  %v1091 = vpack.c.b16 %v1011, %v1009
  %v1092 = vpack.c.b16 %v1012, %v1010
  %v1093 = vpack.c.b16 %v1015, %v1013
  %v1094 = vpack.c.b16 %v1016, %v1014
  %v1095 = vpack.c.b16 %v1019, %v1017
  %v1096 = vpack.c.b16 %v1020, %v1018
  %v1097 = vpack.c.b16 %v1023, %v1021
  %v1098 = vpack.c.b16 %v1024, %v1022
  %v1099 = vpack.c.b16 %v1027, %v1025
  %v1100 = vpack.c.b16 %v1028, %v1026
  %v1101 = vpack.c.b16 %v1031, %v1029
  %v1102 = vpack.c.b16 %v1032, %v1030
  %v1103 = vpack.c.b16 %v1035, %v1033
  %v1104 = vpack.c.b16 %v1036, %v1034
  %v1105 = vpack.c.b16 %v1039, %v1037
  %v1106 = vpack.c.b16 %v1040, %v1038
  %v1107 = vpack.c.b16 %v1043, %v1041
  %v1108 = vpack.c.b16 %v1044, %v1042
  %1173 = vmatprep.subr.bf16.mxu0 %v1046
  %1174 = vmatpush1.bf16.msra.mxu0 %v1045
  %1175 = vmatprep.subr.bf16.mxu0 %v1048
  %1176 = vmatpush1.bf16.msra.mxu0 %v1047
  %1177 = vmatprep.subr.bf16.mxu0 %v1050
  %1178 = vmatpush1.bf16.msra.mxu0 %v1049
  %1179 = vmatprep.subr.bf16.mxu0 %v1052
  %1180 = vmatpush1.bf16.msra.mxu0 %v1051
  %1181 = vmatprep.subr.bf16.mxu0 %v1054
  %1182 = vmatpush1.bf16.msra.mxu0 %v1053
  %1183 = vmatprep.subr.bf16.mxu0 %v1056
  %1184 = vmatpush1.bf16.msra.mxu0 %v1055
  %1185 = vmatprep.subr.bf16.mxu0 %v1058
  %1186 = vmatpush1.bf16.msra.mxu0 %v1057
  %1187 = vmatprep.subr.bf16.mxu0 %v1060
  %1188 = vmatpush1.bf16.msra.mxu0 %v1059
  %1189 = vmatprep.subr.bf16.mxu0 %v1062
  %1190 = vmatpush1.bf16.msra.mxu0 %v1061
  %1191 = vmatprep.subr.bf16.mxu0 %v1064
  %1192 = vmatpush1.bf16.msra.mxu0 %v1063
  %1193 = vmatprep.subr.bf16.mxu0 %v1066
  %1194 = vmatpush1.bf16.msra.mxu0 %v1065
  %1195 = vmatprep.subr.bf16.mxu0 %v1068
  %1196 = vmatpush1.bf16.msra.mxu0 %v1067
  %1197 = vmatprep.subr.bf16.mxu0 %v1070
  %1198 = vmatpush1.bf16.msra.mxu0 %v1069
  %1199 = vmatprep.subr.bf16.mxu0 %v1072
  %1200 = vmatpush1.bf16.msra.mxu0 %v1071
  %1201 = vmatprep.subr.bf16.mxu0 %v1074
  %1202 = vmatpush1.bf16.msra.mxu0 %v1073
  %1203 = vmatprep.subr.bf16.mxu0 %v1076
  %1204 = vmatpush1.bf16.msra.mxu0 %v1075
  %1205 = vmatprep.mubr.bf16.mxu0 %v774
  %1206 = vmatmul.mubr.bf16.gmra.mrb[0].mxu0 %v773
  %v1207 = vpop.f32.mrb[0].mxu0
  %v1208 = vadd.f32 %v846, %v1207
  %v1209 = vpop.f32.mrb[0].mxu0
  %v1210 = vadd.f32 %v850, %v1209
  %v1211 = vpop.f32.mrb[0].mxu0
  %v1212 = vadd.f32 %v846, %v1211
  %v1213 = vpop.f32.mrb[0].mxu0
  %v1214 = vadd.f32 %v850, %v1213
  %1215 = vdwg.mxu0
  %1216 = vmatprep.subr.bf16.mxu0 %v1078
  %1217 = vmatpush1.bf16.msra.mxu0 %v1077
  %1218 = vmatprep.subr.bf16.mxu0 %v1080
  %1219 = vmatpush1.bf16.msra.mxu0 %v1079
  %1220 = vmatprep.subr.bf16.mxu0 %v1082
  %1221 = vmatpush1.bf16.msra.mxu0 %v1081
  %1222 = vmatprep.subr.bf16.mxu0 %v1084
  %1223 = vmatpush1.bf16.msra.mxu0 %v1083
  %1224 = vmatprep.subr.bf16.mxu0 %v1086
  %1225 = vmatpush1.bf16.msra.mxu0 %v1085
  %1226 = vmatprep.subr.bf16.mxu0 %v1088
  %1227 = vmatpush1.bf16.msra.mxu0 %v1087
  %1228 = vmatprep.subr.bf16.mxu0 %v1090
  %1229 = vmatpush1.bf16.msra.mxu0 %v1089
  %1230 = vmatprep.subr.bf16.mxu0 %v1092
  %1231 = vmatpush1.bf16.msra.mxu0 %v1091
  %1232 = vmatprep.subr.bf16.mxu0 %v1094
  %1233 = vmatpush1.bf16.msra.mxu0 %v1093
  %1234 = vmatprep.subr.bf16.mxu0 %v1096
  %1235 = vmatpush1.bf16.msra.mxu0 %v1095
  %1236 = vmatprep.subr.bf16.mxu0 %v1098
  %1237 = vmatpush1.bf16.msra.mxu0 %v1097
  %1238 = vmatprep.subr.bf16.mxu0 %v1100
  %1239 = vmatpush1.bf16.msra.mxu0 %v1099
  %1240 = vmatprep.subr.bf16.mxu0 %v1102
  %1241 = vmatpush1.bf16.msra.mxu0 %v1101
  %1242 = vmatprep.subr.bf16.mxu0 %v1104
  %1243 = vmatpush1.bf16.msra.mxu0 %v1103
  %1244 = vmatprep.subr.bf16.mxu0 %v1106
  %1245 = vmatpush1.bf16.msra.mxu0 %v1105
  %1246 = vmatprep.subr.bf16.mxu0 %v1108
  %1247 = vmatpush1.bf16.msra.mxu0 %v1107
  %1248 = vmatprep.mubr.bf16.mxu0 %v776
  %1249 = vmatmul.mubr.bf16.gmra.mrb[0].mxu0 %v775
  %v1250 = vpop.f32.mrb[0].mxu0
  %v1251 = vadd.f32 %v1208, %v1250
  %v1252 = vpop.f32.mrb[0].mxu0
  %v1253 = vadd.f32 %v1210, %v1252
  %v1254 = vpop.f32.mrb[0].mxu0
  %v1255 = vadd.f32 %v1212, %v1254
  %v1256 = vpop.f32.mrb[0].mxu0
  %v1257 = vadd.f32 %v1214, %v1256
  %1258 = vdwg.mxu0
  %v1259 = vmax.f32 %v1251, 0.0
  %v1260 = vmax.f32 %v1253, 0.0
  %v1261 = vmax.f32 %v1255, 0.0
  %v1262 = vmax.f32 %v1257, 0.0
  %v1263 = vpack.c.bf16 %v1261, %v1259
  %v1264 = vpack.c.bf16 %v1262, %v1260
  %v1265 = vld [vmem:[%s9] sm:$0xf]
  %v1266 = vld [vmem:[%s9 + $0x4] sm:$0xf]
  %v1267 = vld [vmem:[%s9 + $0x8] sm:$0xf]
  %v1268 = vld [vmem:[%s9 + $0xc] sm:$0xf]
  %v1269 = vld [vmem:[%s9 + $0x10] sm:$0xf]
  %v1270 = vld [vmem:[%s9 + $0x14] sm:$0xf]
  %v1271 = vld [vmem:[%s9 + $0x18] sm:$0xf]
  %v1272 = vld [vmem:[%s9 + $0x1c] sm:$0xf]
  %v1273 = vld [vmem:[%s9 + $0x20] sm:$0xf]
  %v1274 = vld [vmem:[%s9 + $0x24] sm:$0xf]
  %v1275 = vld [vmem:[%s9 + $0x28] sm:$0xf]
  %v1276 = vld [vmem:[%s9 + $0x2c] sm:$0xf]
  %v1277 = vld [vmem:[%s9 + $0x30] sm:$0xf]
  %v1278 = vld [vmem:[%s9 + $0x34] sm:$0xf]
  %v1279 = vld [vmem:[%s9 + $0x38] sm:$0xf]
  %v1280 = vld [vmem:[%s9 + $0x3c] sm:$0xf]
  %v1281 = vld [vmem:[%s9 + $0x40] sm:$0xf]
  %v1282 = vld [vmem:[%s9 + $0x44] sm:$0xf]
  %v1283 = vld [vmem:[%s9 + $0x48] sm:$0xf]
  %v1284 = vld [vmem:[%s9 + $0x4c] sm:$0xf]
  %v1285 = vld [vmem:[%s9 + $0x50] sm:$0xf]
  %v1286 = vld [vmem:[%s9 + $0x54] sm:$0xf]
  %v1287 = vld [vmem:[%s9 + $0x58] sm:$0xf]
  %v1288 = vld [vmem:[%s9 + $0x5c] sm:$0xf]
  %v1289 = vld [vmem:[%s9 + $0x60] sm:$0xf]
  %v1290 = vld [vmem:[%s9 + $0x64] sm:$0xf]
  %v1291 = vld [vmem:[%s9 + $0x68] sm:$0xf]
  %v1292 = vld [vmem:[%s9 + $0x6c] sm:$0xf]
  %v1293 = vld [vmem:[%s9 + $0x70] sm:$0xf]
  %v1294 = vld [vmem:[%s9 + $0x74] sm:$0xf]
  %v1295 = vld [vmem:[%s9 + $0x78] sm:$0xf]
  %v1296 = vld [vmem:[%s9 + $0x7c] sm:$0xf]
  %v1297 = vld [vmem:[%s10] sm:$0x1]
  %v1299 = vlaneseq
  %v1300 = vshrl.u32 %v1299, 7
  %v1301 = vsub.s32 0, %v1300
  %v1302 = vrot.slane %v1297, %v1301
  %v1336 = vunpack.c.l.b16 %v1265
  %v1337 = vunpack.c.l.b16 %v1266
  %v1338 = vunpack.c.l.b16 %v1267
  %v1339 = vunpack.c.l.b16 %v1268
  %v1340 = vunpack.c.l.b16 %v1269
  %v1341 = vunpack.c.l.b16 %v1270
  %v1342 = vunpack.c.l.b16 %v1271
  %v1343 = vunpack.c.l.b16 %v1272
  %v1344 = vunpack.c.l.b16 %v1273
  %v1345 = vunpack.c.l.b16 %v1274
  %v1346 = vunpack.c.l.b16 %v1275
  %v1347 = vunpack.c.l.b16 %v1276
  %v1348 = vunpack.c.l.b16 %v1277
  %v1349 = vunpack.c.l.b16 %v1278
  %v1350 = vunpack.c.l.b16 %v1279
  %v1351 = vunpack.c.l.b16 %v1280
  %v1352 = vunpack.c.l.b16 %v1281
  %v1353 = vunpack.c.l.b16 %v1282
  %v1354 = vunpack.c.l.b16 %v1283
  %v1355 = vunpack.c.l.b16 %v1284
  %v1356 = vunpack.c.l.b16 %v1285
  %v1357 = vunpack.c.l.b16 %v1286
  %v1358 = vunpack.c.l.b16 %v1287
  %v1359 = vunpack.c.l.b16 %v1288
  %v1360 = vunpack.c.l.b16 %v1289
  %v1361 = vunpack.c.l.b16 %v1290
  %v1362 = vunpack.c.l.b16 %v1291
  %v1363 = vunpack.c.l.b16 %v1292
  %v1364 = vunpack.c.l.b16 %v1293
  %v1365 = vunpack.c.l.b16 %v1294
  %v1366 = vunpack.c.l.b16 %v1295
  %v1367 = vunpack.c.l.b16 %v1296
  %v1368 = vpack.c.b16 %v1337, %v1336
  %v1369 = vpack.c.b16 %v1339, %v1338
  %v1370 = vpack.c.b16 %v1341, %v1340
  %v1371 = vpack.c.b16 %v1343, %v1342
  %v1372 = vpack.c.b16 %v1345, %v1344
  %v1373 = vpack.c.b16 %v1347, %v1346
  %v1374 = vpack.c.b16 %v1349, %v1348
  %v1375 = vpack.c.b16 %v1351, %v1350
  %v1376 = vpack.c.b16 %v1353, %v1352
  %v1377 = vpack.c.b16 %v1355, %v1354
  %v1378 = vpack.c.b16 %v1357, %v1356
  %v1379 = vpack.c.b16 %v1359, %v1358
  %v1380 = vpack.c.b16 %v1361, %v1360
  %v1381 = vpack.c.b16 %v1363, %v1362
  %v1382 = vpack.c.b16 %v1365, %v1364
  %v1383 = vpack.c.b16 %v1367, %v1366
  %1400 = vmatprep.subr.bf16.mxu0 0
  %1401 = vmatpush1.bf16.msra.mxu0 %v1368
  %1402 = vmatprep.subr.bf16.mxu0 0
  %1403 = vmatpush1.bf16.msra.mxu0 %v1369
  %1404 = vmatprep.subr.bf16.mxu0 0
  %1405 = vmatpush1.bf16.msra.mxu0 %v1370
  %1406 = vmatprep.subr.bf16.mxu0 0
  %1407 = vmatpush1.bf16.msra.mxu0 %v1371
  %1408 = vmatprep.subr.bf16.mxu0 0
  %1409 = vmatpush1.bf16.msra.mxu0 %v1372
  %1410 = vmatprep.subr.bf16.mxu0 0
  %1411 = vmatpush1.bf16.msra.mxu0 %v1373
  %1412 = vmatprep.subr.bf16.mxu0 0
  %1413 = vmatpush1.bf16.msra.mxu0 %v1374
  %1414 = vmatprep.subr.bf16.mxu0 0
  %1415 = vmatpush1.bf16.msra.mxu0 %v1375
  %1416 = vmatprep.subr.bf16.mxu0 0
  %1417 = vmatpush1.bf16.msra.mxu0 %v1376
  %1418 = vmatprep.subr.bf16.mxu0 0
  %1419 = vmatpush1.bf16.msra.mxu0 %v1377
  %1420 = vmatprep.subr.bf16.mxu0 0
  %1421 = vmatpush1.bf16.msra.mxu0 %v1378
  %1422 = vmatprep.subr.bf16.mxu0 0
  %1423 = vmatpush1.bf16.msra.mxu0 %v1379
  %1424 = vmatprep.subr.bf16.mxu0 0
  %1425 = vmatpush1.bf16.msra.mxu0 %v1380
  %1426 = vmatprep.subr.bf16.mxu0 0
  %1427 = vmatpush1.bf16.msra.mxu0 %v1381
  %1428 = vmatprep.subr.bf16.mxu0 0
  %1429 = vmatpush1.bf16.msra.mxu0 %v1382
  %1430 = vmatprep.subr.bf16.mxu0 0
  %1431 = vmatpush1.bf16.msra.mxu0 %v1383
  %1432 = vmatprep.mubr.bf16.mxu0 %v1264
  %1433 = vmatmul.mubr.bf16.gmra.mrb[0].mxu0 %v1263
  %v1434 = vpop.f32.mrb[0].mxu0
  %v1435 = vadd.f32 %v1302, %v1434
  %v1436 = vpop.f32.mrb[0].mxu0
  %v1437 = vpop.f32.mrb[0].mxu0
  %v1438 = vadd.f32 %v1302, %v1437
  %v1439 = vpop.f32.mrb[0].mxu0
  %1440 = vdwg.mxu0
  %v1441 = vmax.f32 %v1435, 0.0
  %v1442 = vmax.f32 %v1438, 0.0
  %v1443 = vpack.c.bf16 %v1442, %v1441
  %v1444 = vld [vmem:[%s11] sm:$0xf]
  %v1445 = vld [vmem:[%s11 + $0x4] sm:$0xf]
  %v1446 = vld [vmem:[%s11 + $0x8] sm:$0xf]
  %v1447 = vld [vmem:[%s11 + $0xc] sm:$0xf]
  %v1448 = vld [vmem:[%s11 + $0x10] sm:$0xf]
  %v1449 = vld [vmem:[%s11 + $0x14] sm:$0xf]
  %v1450 = vld [vmem:[%s11 + $0x18] sm:$0xf]
  %v1451 = vld [vmem:[%s11 + $0x1c] sm:$0xf]
  %v1452 = vld [vmem:[%s11 + $0x20] sm:$0xf]
  %v1453 = vld [vmem:[%s11 + $0x24] sm:$0xf]
  %v1454 = vld [vmem:[%s11 + $0x28] sm:$0xf]
  %v1455 = vld [vmem:[%s11 + $0x2c] sm:$0xf]
  %v1456 = vld [vmem:[%s11 + $0x30] sm:$0xf]
  %v1457 = vld [vmem:[%s11 + $0x34] sm:$0xf]
  %v1458 = vld [vmem:[%s11 + $0x38] sm:$0xf]
  %v1459 = vld [vmem:[%s11 + $0x3c] sm:$0xf]
  %v1476 = vunpack.c.l.b16 %v1444
  %v1477 = vunpack.c.l.b16 %v1445
  %v1478 = vunpack.c.l.b16 %v1446
  %v1479 = vunpack.c.l.b16 %v1447
  %v1480 = vunpack.c.l.b16 %v1448
  %v1481 = vunpack.c.l.b16 %v1449
  %v1482 = vunpack.c.l.b16 %v1450
  %v1483 = vunpack.c.l.b16 %v1451
  %v1484 = vunpack.c.l.b16 %v1452
  %v1485 = vunpack.c.l.b16 %v1453
  %v1486 = vunpack.c.l.b16 %v1454
  %v1487 = vunpack.c.l.b16 %v1455
  %v1488 = vunpack.c.l.b16 %v1456
  %v1489 = vunpack.c.l.b16 %v1457
  %v1490 = vunpack.c.l.b16 %v1458
  %v1491 = vunpack.c.l.b16 %v1459
  %v1492 = vpack.c.b16 %v1477, %v1476
  %v1493 = vpack.c.b16 %v1479, %v1478
  %v1494 = vpack.c.b16 %v1481, %v1480
  %v1495 = vpack.c.b16 %v1483, %v1482
  %v1496 = vpack.c.b16 %v1485, %v1484
  %v1497 = vpack.c.b16 %v1487, %v1486
  %v1498 = vpack.c.b16 %v1489, %v1488
  %v1499 = vpack.c.b16 %v1491, %v1490
  %1508 = vmatprep.subr.bf16.mxu0 0
  %1509 = vmatpush1.bf16.msra.mxu0 %v1492
  %1510 = vmatprep.subr.bf16.mxu0 0
  %1511 = vmatpush1.bf16.msra.mxu0 %v1493
  %1512 = vmatprep.subr.bf16.mxu0 0
  %1513 = vmatpush1.bf16.msra.mxu0 %v1494
  %1514 = vmatprep.subr.bf16.mxu0 0
  %1515 = vmatpush1.bf16.msra.mxu0 %v1495
  %1516 = vmatprep.subr.bf16.mxu0 0
  %1517 = vmatpush1.bf16.msra.mxu0 %v1496
  %1518 = vmatprep.subr.bf16.mxu0 0
  %1519 = vmatpush1.bf16.msra.mxu0 %v1497
  %1520 = vmatprep.subr.bf16.mxu0 0
  %1521 = vmatpush1.bf16.msra.mxu0 %v1498
  %1522 = vmatprep.subr.bf16.mxu0 0
  %1523 = vmatpush1.bf16.msra.mxu0 %v1499
  %1524 = vmatprep.subr.bf16.mxu0 0
  %1525 = vmatpush1.bf16.msra.mxu0 0
  %1526 = vmatprep.subr.bf16.mxu0 0
  %1527 = vmatpush1.bf16.msra.mxu0 0
  %1528 = vmatprep.subr.bf16.mxu0 0
  %1529 = vmatpush1.bf16.msra.mxu0 0
  %1530 = vmatprep.subr.bf16.mxu0 0
  %1531 = vmatpush1.bf16.msra.mxu0 0
  %1532 = vmatprep.subr.bf16.mxu0 0
  %1533 = vmatpush1.bf16.msra.mxu0 0
  %1534 = vmatprep.subr.bf16.mxu0 0
  %1535 = vmatpush1.bf16.msra.mxu0 0
  %1536 = vmatprep.subr.bf16.mxu0 0
  %1537 = vmatpush1.bf16.msra.mxu0 0
  %1538 = vmatprep.subr.bf16.mxu0 0
  %1539 = vmatpush1.bf16.msra.mxu0 0
  %1540 = vmatprep.mubr.bf16.mxu0 0
  %1541 = vmatmul.mubr.bf16.gmra.mrb[0].mxu0 %v1443
  %v1542 = vpop.f32.mrb[0].mxu0
  %v1543 = vadd.f32 0.0, %v1542
  %v1544 = vpop.f32.mrb[0].mxu0
  %v1545 = vpop.f32.mrb[0].mxu0
  %v1546 = vadd.f32 0.0, %v1545
  %v1547 = vpop.f32.mrb[0].mxu0
  %1548 = vdwg.mxu0
  %vm1549 = vcmask 15360
  %1550 = vst.msk [vmem:[%s12] sm:$0xff] %vm1549, %v1543
  %1551 = vst.msk [vmem:[%s12 + $0x8] sm:$0xff] %vm1549, %v1546
  // Predicated region
  $region50: #{_lambda_.1} parent=0 // pred_check
    _
  $region51: #{_lambda_.1} parent=0 // pred_check_branch
    %1553 = sbr.rel (0) target = $region53
  $region52: #{_lambda_.1} parent=0 // pred_region
    _
  $region53: #{_lambda_.1} parent=0 // pred_fallthru
    _
  // Predicated region
  $region54: #{_lambda_.1} parent=0 // pred_check
    _
  $region55: #{_lambda_.1} parent=0 // pred_check_branch
    %1555 = sbr.rel (0) target = $region57
  $region56: #{_lambda_.1} parent=0 // pred_region
    _
  $region57: #{_lambda_.1} parent=0 // pred_fallthru
    _

</llo_original>
